<compile_context>
chip_gen: v5e
topology: v5e:2x2
jax: 0.10.0
libtpu: 0.0.40
codegen_flags: <defaults>
</compile_context>

<pallas_src>
import jax
import jax.numpy as jnp
from jax.experimental import pallas as pl
from jax.experimental.pallas import tpu as pltpu


def _round_up(x, m):
    return (x + m - 1) // m * m


def _round_down_min(x, m):
    return max(m, (x // m) * m)


def _vmem_budget_bytes():
    """Spendable VMEM, generation-aware (v7x: 64 MiB/TC, v5e/v6e: 128 MiB)."""
    cap = 64 * 1024 * 1024  # conservative fallback = v7x floor
    try:
        info = pltpu.get_tpu_info()
        cap = int(getattr(info, "vmem_capacity_bytes", cap))
    except Exception:
        pass
    return (cap * 3) // 4  # leave 25% headroom for Mosaic internals


def _sine_layer_kernel(x_ref, w_ref, b_ref, o_ref):
    x = x_ref[...]
    w = w_ref[...]
    if x.dtype != w.dtype:
        # bf16 compute path: cast inside VMEM (no extra HBM traffic).
        x = x.astype(w.dtype)
    # MXU matmul, f32 accumulate, precision pinned explicitly.
    z = jnp.dot(x, w, preferred_element_type=jnp.float32,
                precision=jax.lax.Precision.HIGHEST)
    # Bias (already scaled by omega_0) broadcast-add in f32, then sin (VPU).
    z = z + b_ref[...]
    o_ref[...] = jnp.sin(z).astype(o_ref.dtype)


def prepare_sine_layer_params(weight, bias, omega_0=30.0,
                              param_dtype=jnp.float32):
    """Pre-transpose, omega-fold and (conditionally) lane-pad params ONCE.

    Args:
      weight: (out_features, in_features) — PyTorch nn.Linear layout.
      bias:   (out_features,)
      omega_0: SIREN frequency; folded into W and b so the kernel computes
               sin(x @ (omega*W^T) + omega*b) == sin(omega*(x@W^T + b)).
      param_dtype: dtype of the stored weight (f32 or bf16).
    Returns:
      w_t: (in_features, d_out_p) scaled, transposed weight.
      b2:  (1, d_out_p) scaled bias (float32).
      d_out: true output width (for the optional post-kernel slice).
    """
    d_out, d_in = weight.shape
    if d_out % 128 == 0 or d_out < 64:
        d_out_p = d_out                       # true width (masked stores OK)
    else:
        d_out_p = _round_up(d_out, 128)       # lane-dense output stores

    omega = jnp.float32(omega_0)
    w_scaled = (omega * weight.astype(jnp.float32)).T        # (d_in, d_out)
    b_scaled = omega * bias.astype(jnp.float32)              # (d_out,)

    if d_out_p == d_out:
        w_t = w_scaled.astype(param_dtype)
        b2 = b_scaled.reshape(1, d_out)
    else:
        w_t = jnp.zeros((d_in, d_out_p), param_dtype).at[:, :d_out].set(
            w_scaled.astype(param_dtype))
        b2 = jnp.zeros((1, d_out_p), jnp.float32).at[0, :d_out].set(b_scaled)
    return w_t, b2, d_out


def sine_layer_apply(x, w_t, b2, d_out, tile_n=None):
    """Forward with pre-prepared params.  x: (..., in_features)."""
    lead_shape = x.shape[:-1]
    d_in = x.shape[-1]
    assert w_t.shape[0] == d_in
    d_out_p = w_t.shape[1]

    x2 = x.reshape(-1, d_in)       # no row / feature padding — ragged grid
    n = x2.shape[0]

    x_bytes = x2.dtype.itemsize
    w_bytes = w_t.dtype.itemsize
    o_bytes = x2.dtype.itemsize

    # ---- tile_n selection: VMEM-budget-aware, megacore-friendly -----------
    budget = _vmem_budget_bytes()
    # Pallas double-buffers every input by default -> count resident W/b x2.
    resident = 2 * (d_in * d_out_p * w_bytes + d_out_p * 4)
    per_row = 2 * (d_in * x_bytes + d_out_p * o_bytes)   # dbl-buffered x/out
    if tile_n is None:
        tile_n = 2048 if (d_in + d_out_p) <= 1024 else 512
    max_rows = (budget - resident - (2 << 20)) // per_row
    tile_n = min(tile_n, _round_down_min(int(max(max_rows, 8)), 8))
    # At least ~4 grid steps so ("parallel",) can shard across v7x's 2 TCs.
    tile_n = max(8, min(tile_n, _round_up(pl.cdiv(n, 4), 8)))

    grid = (pl.cdiv(n, tile_n),)

    vmem_limit = int(min(max(resident + tile_n * per_row + (2 << 20), 8 << 20),
                         budget))

    cost = pl.CostEstimate(
        flops=2 * n * d_in * d_out_p,
        transcendentals=n * d_out_p,
        bytes_accessed=(n * d_in * x_bytes + d_in * d_out_p * w_bytes
                        + d_out_p * 4 + n * d_out_p * o_bytes),
    )

    out = pl.pallas_call(
        _sine_layer_kernel,
        out_shape=jax.ShapeDtypeStruct((n, d_out_p), x.dtype),
        grid=grid,
        in_specs=[
            pl.BlockSpec((tile_n, d_in), lambda i: (i, 0)),    # streamed x
            pl.BlockSpec((d_in, d_out_p), lambda i: (0, 0)),   # resident W
            pl.BlockSpec((1, d_out_p), lambda i: (0, 0)),      # resident b
        ],
        out_specs=pl.BlockSpec((tile_n, d_out_p), lambda i: (i, 0)),
        compiler_params=pltpu.CompilerParams(
            dimension_semantics=("parallel",),
            vmem_limit_bytes=vmem_limit,
        ),
        cost_estimate=cost,
    )(x2, w_t, b2)

    if d_out_p != d_out:
        out = out[:, :d_out]
    return out.reshape(*lead_shape, d_out)


def sine_layer(x, weight, bias, omega_0=30.0, tile_n=None,
               param_dtype=jnp.float32):
    """Convenience wrapper taking PyTorch nn.Linear layout params.

    For repeated use call prepare_sine_layer_params once and reuse
    sine_layer_apply (the transpose / omega-fold / pad is off the hot path).
    """
    w_t, b2, d_out = prepare_sine_layer_params(weight, bias, omega_0,
                                               param_dtype)
    return sine_layer_apply(x, w_t, b2, d_out, tile_n)


def init_sine_layer_params(key, in_features, out_features, is_first, omega_0):
    """Deterministic SIREN init matching SineLayer.init_weights()."""
    kw, kb = jax.random.split(key)
    if is_first:
        bound_w = 1.0 / in_features
    else:
        bound_w = float(jnp.sqrt(6.0 / in_features)) / omega_0
    weight = jax.random.uniform(
        kw, (out_features, in_features), jnp.float32,
        minval=-bound_w, maxval=bound_w)
    # nn.Linear default bias init: uniform(-1/sqrt(in), 1/sqrt(in))
    bound_b = 1.0 / float(jnp.sqrt(jnp.asarray(in_features, jnp.float32)))
    bias = jax.random.uniform(
        kb, (out_features,), jnp.float32, minval=-bound_b, maxval=bound_b)
    return weight, bias


if __name__ == "__main__":
    key = jax.random.PRNGKey(0)
    keys = jax.random.split(key, 4)
    omega_0 = 30.0

    def ref_sine(x, w, b):
        z = jnp.dot(x, w.T, precision=jax.lax.Precision.HIGHEST) + b
        return jnp.sin(omega_0 * z)

    # Case 1: first SIREN layer on a 16x16 coordinate grid (d_in=2, d_out=32).
    # Exercises: tiny unpadded d_in, unpadded narrow output, multi-dim leading shape.
    H = W = 16
    coords = jnp.stack(
        jnp.meshgrid(jnp.linspace(-1.0, 1.0, H), jnp.linspace(-1.0, 1.0, W),
                     indexing="ij"), axis=-1)                     # (16, 16, 2)
    w1, b1 = init_sine_layer_params(keys[0], 2, 32, is_first=True,
                                    omega_0=omega_0)
    out1 = jax.block_until_ready(sine_layer(coords, w1, b1, omega_0))
    ref1 = ref_sine(coords.reshape(-1, 2), w1, b1).reshape(H, W, 32)
    assert out1.shape == (H, W, 32)
    assert jnp.allclose(out1, ref1, atol=1e-5, rtol=1e-5)

    # Case 2: hidden layer with a ragged batch (600 rows, 64 -> 64).
    # Exercises: ragged last grid block, lane-padded output (64 -> 128) + slice,
    # pre-prepared-params path.
    x2 = jax.random.uniform(keys[1], (600, 64), jnp.float32,
                            minval=-1.0, maxval=1.0)
    w2, b2 = init_sine_layer_params(keys[2], 64, 64, is_first=False,
                                    omega_0=omega_0)
    w2_t, b2_p, do2 = prepare_sine_layer_params(w2, b2, omega_0)
    out2 = jax.block_until_ready(sine_layer_apply(x2, w2_t, b2_p, do2))
    ref2 = ref_sine(x2, w2, b2)
    assert out2.shape == (600, 64)
    assert jnp.allclose(out2, ref2, atol=1e-5, rtol=1e-5)

    # Case 3: narrow output layer (d_out=3): true-width output, no padding or
    # post-kernel slice.
    w3, b3 = init_sine_layer_params(keys[3], 64, 3, is_first=False,
                                    omega_0=omega_0)
    out3 = jax.block_until_ready(sine_layer(x2, w3, b3, omega_0))
    ref3 = ref_sine(x2, w3, b3)
    assert out3.shape == (600, 3)
    assert jnp.allclose(out3, ref3, atol=1e-5, rtol=1e-5)

    # Case 4: bf16 matmul-operand path (halves weight HBM traffic, single MXU
    # pass on v5e/v6e).  Accuracy tradeoff: relaxed tolerance.
    out4 = jax.block_until_ready(
        sine_layer(x2, w2, b2, omega_0, param_dtype=jnp.bfloat16))
    assert out4.shape == (600, 64)
    assert jnp.allclose(out4, ref2, atol=3e-2, rtol=0.0)

    print("KERNEL_OK")
</pallas_src>

<mosaic_0001>
module attributes {stable_mosaic.version = 11 : i64} {
  func.func @_sine_layer_kernel(%arg0: i32, %arg1: memref<64x2xf32, #tpu.memory_space<vmem>>, %arg2: memref<2x32xf32, #tpu.memory_space<vmem>>, %arg3: memref<1x32xf32, #tpu.memory_space<vmem>>, %arg4: memref<64x32xf32, #tpu.memory_space<vmem>>) attributes {dimension_semantics = [#tpu.dimension_semantics<parallel>], iteration_bounds = array<i64: 4>, scalar_prefetch = 0 : i64, scratch_operands = 0 : i64, tpu.core_type = #tpu.core_type<tc>, window_params = [{transform_indices = @transform_0, window_bounds = array<i64: 64, 2>}, {pipeline_mode = #tpu.pipeline_mode<synchronous>, transform_indices = @transform_1, window_bounds = array<i64: 2, 32>}, {pipeline_mode = #tpu.pipeline_mode<synchronous>, transform_indices = @transform_2, window_bounds = array<i64: 1, 32>}, {transform_indices = @transform_3, window_bounds = array<i64: 64, 32>}]} {
    %c0 = arith.constant 0 : index
    %c0_0 = arith.constant 0 : index
    %0 = vector.load %arg1[%c0, %c0_0] : memref<64x2xf32, #tpu.memory_space<vmem>>, vector<64x2xf32>
    %c0_1 = arith.constant 0 : index
    %c0_2 = arith.constant 0 : index
    %1 = vector.load %arg2[%c0_1, %c0_2] : memref<2x32xf32, #tpu.memory_space<vmem>>, vector<2x32xf32>
    %cst = arith.constant dense<0.000000e+00> : vector<64x32xf32>
    %2 = tpu.matmul %0, %1, %cst {dimension_numbers = #tpu.dot_dimension_numbers<[1], [0], [0], [1], [0, 0, 1, 1], [], []>, precision = #tpu.contract_precision<fp32>} : vector<64x2xf32>, vector<2x32xf32>, vector<64x32xf32> -> vector<64x32xf32>
    %c0_3 = arith.constant 0 : index
    %c0_4 = arith.constant 0 : index
    %3 = vector.load %arg3[%c0_3, %c0_4] : memref<1x32xf32, #tpu.memory_space<vmem>>, vector<1x32xf32>
    %4 = vector.broadcast %3 : vector<1x32xf32> to vector<64x32xf32>
    %5 = arith.addf %2, %4 : vector<64x32xf32>
    %6 = math.sin %5 : vector<64x32xf32>
    %c0_5 = arith.constant 0 : index
    %c0_6 = arith.constant 0 : index
    %7 = vector.load %arg4[%c0_5, %c0_6] : memref<64x32xf32, #tpu.memory_space<vmem>>, vector<64x32xf32>
    tpu.vector_store %arg4[%c0_5, %c0_6], %6 {strides = array<i32>} : memref<64x32xf32, #tpu.memory_space<vmem>>, vector<64x32xf32>,
    return
  }
  func.func @transform_0(%arg0: i32) -> (i32, i32) {
    %c0_i32 = arith.constant 0 : i32
    %c0_i32_0 = arith.constant 0 : i32
    return %arg0, %c0_i32 : i32, i32
  }
  func.func @transform_1(%arg0: i32) -> (i32, i32) {
    %c0_i32 = arith.constant 0 : i32
    %c0_i32_0 = arith.constant 0 : i32
    %c0_i32_1 = arith.constant 0 : i32
    return %c0_i32, %c0_i32_0 : i32, i32
  }
  func.func @transform_2(%arg0: i32) -> (i32, i32) {
    %c0_i32 = arith.constant 0 : i32
    %c0_i32_0 = arith.constant 0 : i32
    %c0_i32_1 = arith.constant 0 : i32
    return %c0_i32, %c0_i32_0 : i32, i32
  }
  func.func @transform_3(%arg0: i32) -> (i32, i32) {
    %c0_i32 = arith.constant 0 : i32
    %c0_i32_0 = arith.constant 0 : i32
    return %arg0, %c0_i32 : i32, i32
  }
}

</mosaic_0001>

<llo_original>
// kernel: tpu_custom_call.1
$region0: #{tpu_custom_call.1}
  #allocation0 [shape = 'u32[]', space=smem, size = 0x4, offset = 0x4, fixed_abs, tag = 'smem constant byte address 0x4 - core index']
  #allocation1 [shape = 'u32[72,128]{1,0:T(1,128)}', space=vmem, size = 0x9000, scoped, tag = 'internal scratch']
  %s0 = inlined_call_operand.vmem [shape: f32[256,2], index: 0, kind: input, shape index: {}]
  %s1 = inlined_call_operand.vmem [shape: f32[2,32], index: 1, kind: input, shape index: {}]
  %s2 = inlined_call_operand.vmem [shape: f32[1,32], index: 2, kind: input, shape index: {}]
  %s3 = inlined_call_operand.vmem [shape: f32[256,32], index: 3, kind: output, shape index: {}]
  %s4 = sld [smem:[#allocation0]]
  $region45: #{tpu_custom_call.1} parent=0
    _
  %s6 = ssub.s32 1, %s4
  %s7 = scalar_select 0, %s6, %s4
  loop: start=0, step=1, limit=6
  $region2: #{tpu_custom_call.1} parent=0 // loop_pre_header
    _
  $region3: #{tpu_custom_call.1} parent=0 // loop_header
    %s9 = sphi 0, %s13
    %p10 = scmp.ge.s32.totalorder %s9, 6
    %s19 = sphi 0, %s21
    %s22 = sphi 0, %s19
    %s23 = sphi 0, %s22
    %s39 = sphi 0, %s23
    %s43 = sphi 0, %s43
    %s45 = sphi 0, %s43
    %s46 = sphi 0, %s45
    %s60 = sphi 0, %s46
    %s64 = sphi 0, %s64
    %s66 = sphi 0, %s64
    %s67 = sphi 0, %s66
    %s81 = sphi 0, %s67
    %s87 = sphi 0, %s89
    %s90 = sphi 0, %s87
    %s91 = sphi 0, %s90
    %s107 = sphi 0, %s91
  $region4: #{tpu_custom_call.1} parent=0 // loop_header_branch
    %12 = sbr.rel (%p10) target = $region8
  $region5: #{tpu_custom_call.1} parent=0 // loop_body
    %s14 = ssub.s32 %s9, 1
    %s15 = ssub.s32 %s9, 2
    %s16 = sadd.s32 %s9, 1
    %s17 = ssub.s32 %s9, %s16
    %p18 = scmp.eq.s32.totalorder %s17, 0
    %s20 = sadd.s32 %s19, 1
    %s21 = scalar_select %p18, %s19, %s20
    %p24 = pneg %p18
    %p25 = scmp.eq.s32.totalorder %s9, 3
    %p26 = por %p24, %p25
    %p27 = scmp.ne.s32.totalorder %s19, %s22
    %p28 = scmp.eq.s32.totalorder %s9, 0
    %p29 = por %p27, %p28
    %p30 = scmp.ne.s32.totalorder %s19, %s22
    %p31 = scmp.eq.s32.totalorder %s14, 3
    %p32 = por %p30, %p31
    %p33 = scmp.ne.s32.totalorder %s22, %s23
    %p34 = scmp.eq.s32.totalorder %s14, 0
    %p35 = por %p33, %p34
    %p36 = scmp.ne.s32.totalorder %s22, %s23
    %p37 = scmp.eq.s32.totalorder %s15, 3
    %p38 = por %p36, %p37
    %p40 = scmp.ne.s32.totalorder %s23, %s39
    %p41 = scmp.eq.s32.totalorder %s15, 0
    %p42 = por %p40, %p41
    %s44 = sadd.s32 %s43, 1
    %p47 = scmp.eq.s32.totalorder %s9, 3
    %p48 = scmp.ne.s32.totalorder %s43, %s45
    %p49 = scmp.eq.s32.totalorder %s9, 0
    %p50 = por %p48, %p49
    %p51 = scmp.ne.s32.totalorder %s43, %s45
    %p52 = scmp.eq.s32.totalorder %s14, 3
    %p53 = por %p51, %p52
    %p54 = scmp.ne.s32.totalorder %s45, %s46
    %p55 = scmp.eq.s32.totalorder %s14, 0
    %p56 = por %p54, %p55
    %p57 = scmp.ne.s32.totalorder %s45, %s46
    %p58 = scmp.eq.s32.totalorder %s15, 3
    %p59 = por %p57, %p58
    %p61 = scmp.ne.s32.totalorder %s46, %s60
    %p62 = scmp.eq.s32.totalorder %s15, 0
    %p63 = por %p61, %p62
    %s65 = sadd.s32 %s64, 1
    %p68 = scmp.eq.s32.totalorder %s9, 3
    %p69 = scmp.ne.s32.totalorder %s64, %s66
    %p70 = scmp.eq.s32.totalorder %s9, 0
    %p71 = por %p69, %p70
    %p72 = scmp.ne.s32.totalorder %s64, %s66
    %p73 = scmp.eq.s32.totalorder %s14, 3
    %p74 = por %p72, %p73
    %p75 = scmp.ne.s32.totalorder %s66, %s67
    %p76 = scmp.eq.s32.totalorder %s14, 0
    %p77 = por %p75, %p76
    %p78 = scmp.ne.s32.totalorder %s66, %s67
    %p79 = scmp.eq.s32.totalorder %s15, 3
    %p80 = por %p78, %p79
    %p82 = scmp.ne.s32.totalorder %s67, %s81
    %p83 = scmp.eq.s32.totalorder %s15, 0
    %p84 = por %p82, %p83
    %s85 = ssub.s32 %s9, %s16
    %p86 = scmp.eq.s32.totalorder %s85, 0
    %s88 = sadd.s32 %s87, 1
    %s89 = scalar_select %p86, %s87, %s88
    %p92 = pneg %p86
    %p93 = scmp.eq.s32.totalorder %s9, 3
    %p94 = por %p92, %p93
    %p95 = scmp.ne.s32.totalorder %s87, %s90
    %p96 = scmp.eq.s32.totalorder %s9, 0
    %p97 = por %p95, %p96
    %p98 = scmp.ne.s32.totalorder %s87, %s90
    %p99 = scmp.eq.s32.totalorder %s14, 3
    %p100 = por %p98, %p99
    %p101 = scmp.ne.s32.totalorder %s90, %s91
    %p102 = scmp.eq.s32.totalorder %s14, 0
    %p103 = por %p101, %p102
    %p104 = scmp.ne.s32.totalorder %s90, %s91
    %p105 = scmp.eq.s32.totalorder %s15, 3
    %p106 = por %p104, %p105
    %p108 = scmp.ne.s32.totalorder %s91, %s107
    %p109 = scmp.eq.s32.totalorder %s15, 0
    %p110 = por %p108, %p109
    %p111 = scmp.le.s32.totalorder 1, %s9
    %p112 = scmp.lt.s32.totalorder %s9, 5
    %p113 = pnand %p111, %p112
    %p114 = pneg %p113
    // Predicated region
    $region9: #{tpu_custom_call.1} parent=5 // pred_check
      _
    $region10: #{tpu_custom_call.1} parent=5 // pred_check_branch
      %116 = sbr.rel (%p113) target = $region12
    $region11: #{tpu_custom_call.1} parent=5 // pred_region
      %s117 = ssub.s32 %s9, 1
      // Predicated region
      $region13: #{tpu_custom_call.1} parent=11 // pred_check
        %p118 = pneg %p56
      $region14: #{tpu_custom_call.1} parent=11 // pred_check_branch
        %120 = sbr.rel (%p118) target = $region16
      $region15: #{tpu_custom_call.1} parent=11 // pred_region
        _
      $region16: #{tpu_custom_call.1} parent=11 // pred_fallthru
        _
      // Predicated region
      $region17: #{tpu_custom_call.1} parent=11 // pred_check
        %p121 = pneg %p77
      $region18: #{tpu_custom_call.1} parent=11 // pred_check_branch
        %123 = sbr.rel (%p121) target = $region20
      $region19: #{tpu_custom_call.1} parent=11 // pred_region
        _
      $region20: #{tpu_custom_call.1} parent=11 // pred_fallthru
        _
    $region12: #{tpu_custom_call.1} parent=5 // pred_fallthru
      _
    %p124 = scmp.lt.s32.totalorder %s9, 4
    // Predicated region
    $region21: #{tpu_custom_call.1} parent=5 // pred_check
      %p125 = pneg %p124
    $region22: #{tpu_custom_call.1} parent=5 // pred_check_branch
      %127 = sbr.rel (%p125) target = $region24
    $region23: #{tpu_custom_call.1} parent=5 // pred_region
      // Predicated region
      $region25: #{tpu_custom_call.1} parent=23 // pred_check
        %p128 = pneg %p29
      $region26: #{tpu_custom_call.1} parent=23 // pred_check_branch
        %130 = sbr.rel (%p128) target = $region28
      $region27: #{tpu_custom_call.1} parent=23 // pred_region
        %s131 = smul.u32 8, %s9
        %p132 = scmp.lt.s32.totalorder %s131, 31
        %s133 = scalar_select %p132, %s131, 31
        %s134 = smul.addr %s133, 8
        %s135 = scalar_lea.vmem %s0, %s134
        %s136 = smul.u32 8, %s9
      $region28: #{tpu_custom_call.1} parent=23 // pred_fallthru
        _
    $region24: #{tpu_custom_call.1} parent=5 // pred_fallthru
      _
    %p137 = scmp.le.s32.totalorder 1, %s9
    %p138 = scmp.lt.s32.totalorder %s9, 5
    %p139 = pnand %p137, %p138
    %p140 = pneg %p139
    // Predicated region
    $region29: #{tpu_custom_call.1} parent=5 // pred_check
      _
    $region30: #{tpu_custom_call.1} parent=5 // pred_check_branch
      %142 = sbr.rel (%p139) target = $region32
    $region31: #{tpu_custom_call.1} parent=5 // pred_region
      %s143 = ssub.s32 %s9, 1
      %s144 = smul.u32 8, %s14
      %p145 = scmp.lt.s32.totalorder %s144, 31
      %s146 = scalar_select %p145, %s144, 31
      %s147 = smul.addr %s146, 8
      %s148 = scalar_lea.vmem %s0, %s147
      %p149 = pneg %p35
      %p150 = pneg %p32
      %p151 = pneg %p56
      %p152 = pneg %p53
      %p153 = pneg %p77
      %p154 = pneg %p74
      %p155 = pneg %p103
      %p156 = pneg %p100
      %s157 = smul.u32 8, %s14
      %p158 = scmp.lt.s32.totalorder %s157, 31
      %s159 = scalar_select %p158, %s157, 31
      %s160 = smul.addr %s159, 8
      %s161 = scalar_lea.vmem %s3, %s160
      %s162 = smul.u32 8, %s14
      %p163 = scmp.lt.s32.totalorder %s162, 31
      %s164 = scalar_select %p163, %s162, 31
      %s165 = smul.addr %s164, 8
      %s166 = scalar_lea.vmem %s0, %s165
      %s167 = smul.u32 8, %s14
      %s168 = smul.u32 8, %s14
      %p169 = scmp.lt.s32.totalorder %s168, 31
      %s170 = scalar_select %p169, %s168, 31
      %s171 = smul.addr %s170, 8
      %s172 = scalar_lea.vmem %s3, %s171
      %s173 = smul.u32 8, %s14
      %v174 = vld [vmem:[%s166] sm:$0xff]
      %v175 = vld [vmem:[%s166 + $0x8] sm:$0xff]
      %v176 = vld [vmem:[%s166 + $0x10] sm:$0xff]
      %v177 = vld [vmem:[%s166 + $0x18] sm:$0xff]
      %v178 = vld [vmem:[%s166 + $0x20] sm:$0xff]
      %v179 = vld [vmem:[%s166 + $0x28] sm:$0xff]
      %v180 = vld [vmem:[%s166 + $0x30] sm:$0xff]
      %v181 = vld [vmem:[%s166 + $0x38] sm:$0xff]
      %v182 = vld [vmem:[%s1] sm:$0x3]
      %v183 = vld [vmem:[%s2] sm:$0x1]
      %v185 = vperm.slane %v183, 0
      %vm187 = vcmask 15360
      %v189 = vsel %vm187, %v174, 0
      %v192 = vsel %vm187, %v175, 0
      %v195 = vsel %vm187, %v176, 0
      %v198 = vsel %vm187, %v177, 0
      %v201 = vsel %vm187, %v178, 0
      %v204 = vsel %vm187, %v179, 0
      %v207 = vsel %vm187, %v180, 0
      %v210 = vsel %vm187, %v181, 0
      %vm212 = vcmask 1041408
      %v214 = vsel %vm212, %v182, 0
      %216 = vmatpush.msra.mxu0 0.0
      %217 = vmatpush.msra.mxu0 0.0
      %218 = vmatpush.msra.mxu0 0.0
      %219 = vmatpush.msra.mxu0 0.0
      %220 = vmatpush.msra.mxu0 0.0
      %221 = vmatpush.msra.mxu0 0.0
      %222 = vmatpush.msra.mxu0 0.0
      %223 = vmatpush.msra.mxu0 0.0
      %224 = vmatpush.msra.mxu0 0.0
      %225 = vmatpush.msra.mxu0 0.0
      %226 = vmatpush.msra.mxu0 0.0
      %227 = vmatpush.msra.mxu0 0.0
      %228 = vmatpush.msra.mxu0 0.0
      %229 = vmatpush.msra.mxu0 0.0
      %230 = vmatpush.msra.mxu0 0.0
      %v231 = vand.u32 %v214, 4294901760
      %232 = vmatpush.msra.mxu0 %v231
      %v233 = vand.u32 %v189, 4294901760
      %v234 = vsub.f32 %v189, %v233
      %v235 = vand.u32 %v234, 4294901760
      %v236 = vsub.f32 %v234, %v235
      %v237 = vand.u32 %v236, 4294901760
      %238 = vmatmul.f32.gmra.mxu0 %v237
      %v239 = vpop.f32.mrf.mxu0
      %v240 = vadd.f32 %v185, %v239
      %v241 = vand.u32 %v192, 4294901760
      %v242 = vsub.f32 %v192, %v241
      %v243 = vand.u32 %v242, 4294901760
      %v244 = vsub.f32 %v242, %v243
      %v245 = vand.u32 %v244, 4294901760
      %246 = vmatmul.f32.gmra.mxu0 %v245
      %v247 = vpop.f32.mrf.mxu0
      %v248 = vadd.f32 %v185, %v247
      %v249 = vand.u32 %v195, 4294901760
      %v250 = vsub.f32 %v195, %v249
      %v251 = vand.u32 %v250, 4294901760
      %v252 = vsub.f32 %v250, %v251
      %v253 = vand.u32 %v252, 4294901760
      %254 = vmatmul.f32.gmra.mxu0 %v253
      %v255 = vpop.f32.mrf.mxu0
      %v256 = vadd.f32 %v185, %v255
      %v257 = vand.u32 %v198, 4294901760
      %v258 = vsub.f32 %v198, %v257
      %v259 = vand.u32 %v258, 4294901760
      %v260 = vsub.f32 %v258, %v259
      %v261 = vand.u32 %v260, 4294901760
      %262 = vmatmul.f32.gmra.mxu0 %v261
      %v263 = vpop.f32.mrf.mxu0
      %v264 = vadd.f32 %v185, %v263
      %v265 = vand.u32 %v201, 4294901760
      %v266 = vsub.f32 %v201, %v265
      %v267 = vand.u32 %v266, 4294901760
      %v268 = vsub.f32 %v266, %v267
      %v269 = vand.u32 %v268, 4294901760
      %270 = vmatmul.f32.gmra.mxu0 %v269
      %v271 = vpop.f32.mrf.mxu0
      %v272 = vadd.f32 %v185, %v271
      %v273 = vand.u32 %v204, 4294901760
      %v274 = vsub.f32 %v204, %v273
      %v275 = vand.u32 %v274, 4294901760
      %v276 = vsub.f32 %v274, %v275
      %v277 = vand.u32 %v276, 4294901760
      %278 = vmatmul.f32.gmra.mxu0 %v277
      %v279 = vpop.f32.mrf.mxu0
      %v280 = vadd.f32 %v185, %v279
      %v281 = vand.u32 %v207, 4294901760
      %v282 = vsub.f32 %v207, %v281
      %v283 = vand.u32 %v282, 4294901760
      %v284 = vsub.f32 %v282, %v283
      %v285 = vand.u32 %v284, 4294901760
      %286 = vmatmul.f32.gmra.mxu0 %v285
      %v287 = vpop.f32.mrf.mxu0
      %v288 = vadd.f32 %v185, %v287
      %v289 = vand.u32 %v210, 4294901760
      %v290 = vsub.f32 %v210, %v289
      %v291 = vand.u32 %v290, 4294901760
      %v292 = vsub.f32 %v290, %v291
      %v293 = vand.u32 %v292, 4294901760
      %294 = vmatmul.f32.gmra.mxu0 %v293
      %v295 = vpop.f32.mrf.mxu0
      %v296 = vadd.f32 %v185, %v295
      %297 = vdwg.mxu0
      %298 = vmatpush.msra.mxu0 0.0
      %299 = vmatpush.msra.mxu0 0.0
      %300 = vmatpush.msra.mxu0 0.0
      %301 = vmatpush.msra.mxu0 0.0
      %302 = vmatpush.msra.mxu0 0.0
      %303 = vmatpush.msra.mxu0 0.0
      %304 = vmatpush.msra.mxu0 0.0
      %305 = vmatpush.msra.mxu0 0.0
      %306 = vmatpush.msra.mxu0 0.0
      %307 = vmatpush.msra.mxu0 0.0
      %308 = vmatpush.msra.mxu0 0.0
      %309 = vmatpush.msra.mxu0 0.0
      %310 = vmatpush.msra.mxu0 0.0
      %311 = vmatpush.msra.mxu0 0.0
      %312 = vmatpush.msra.mxu0 0.0
      %v313 = vand.u32 %v214, 4294901760
      %v314 = vsub.f32 %v214, %v313
      %v315 = vand.u32 %v314, 4294901760
      %v316 = vsub.f32 %v314, %v315
      %v317 = vand.u32 %v316, 4294901760
      %318 = vmatpush.msra.mxu0 %v317
      %v319 = vand.u32 %v189, 4294901760
      %320 = vmatmul.f32.gmra.mxu0 %v319
      %v321 = vpop.f32.mrf.mxu0
      %v322 = vadd.f32 %v240, %v321
      %v323 = vand.u32 %v192, 4294901760
      %324 = vmatmul.f32.gmra.mxu0 %v323
      %v325 = vpop.f32.mrf.mxu0
      %v326 = vadd.f32 %v248, %v325
      %v327 = vand.u32 %v195, 4294901760
      %328 = vmatmul.f32.gmra.mxu0 %v327
      %v329 = vpop.f32.mrf.mxu0
      %v330 = vadd.f32 %v256, %v329
      %v331 = vand.u32 %v198, 4294901760
      %332 = vmatmul.f32.gmra.mxu0 %v331
      %v333 = vpop.f32.mrf.mxu0
      %v334 = vadd.f32 %v264, %v333
      %v335 = vand.u32 %v201, 4294901760
      %336 = vmatmul.f32.gmra.mxu0 %v335
      %v337 = vpop.f32.mrf.mxu0
      %v338 = vadd.f32 %v272, %v337
      %v339 = vand.u32 %v204, 4294901760
      %340 = vmatmul.f32.gmra.mxu0 %v339
      %v341 = vpop.f32.mrf.mxu0
      %v342 = vadd.f32 %v280, %v341
      %v343 = vand.u32 %v207, 4294901760
      %344 = vmatmul.f32.gmra.mxu0 %v343
      %v345 = vpop.f32.mrf.mxu0
      %v346 = vadd.f32 %v288, %v345
      %v347 = vand.u32 %v210, 4294901760
      %348 = vmatmul.f32.gmra.mxu0 %v347
      %v349 = vpop.f32.mrf.mxu0
      %v350 = vadd.f32 %v296, %v349
      %351 = vdwg.mxu0
      %352 = vmatpush.msra.mxu0 0.0
      %353 = vmatpush.msra.mxu0 0.0
      %354 = vmatpush.msra.mxu0 0.0
      %355 = vmatpush.msra.mxu0 0.0
      %356 = vmatpush.msra.mxu0 0.0
      %357 = vmatpush.msra.mxu0 0.0
      %358 = vmatpush.msra.mxu0 0.0
      %359 = vmatpush.msra.mxu0 0.0
      %360 = vmatpush.msra.mxu0 0.0
      %361 = vmatpush.msra.mxu0 0.0
      %362 = vmatpush.msra.mxu0 0.0
      %363 = vmatpush.msra.mxu0 0.0
      %364 = vmatpush.msra.mxu0 0.0
      %365 = vmatpush.msra.mxu0 0.0
      %366 = vmatpush.msra.mxu0 0.0
      %v367 = vand.u32 %v214, 4294901760
      %v368 = vsub.f32 %v214, %v367
      %369 = vmatpush.msra.mxu0 %v368
      %v370 = vand.u32 %v189, 4294901760
      %v371 = vsub.f32 %v189, %v370
      %372 = vmatmul.f32.gmra.mxu0 %v371
      %v373 = vpop.f32.mrf.mxu0
      %v374 = vadd.f32 %v322, %v373
      %v375 = vand.u32 %v192, 4294901760
      %v376 = vsub.f32 %v192, %v375
      %377 = vmatmul.f32.gmra.mxu0 %v376
      %v378 = vpop.f32.mrf.mxu0
      %v379 = vadd.f32 %v326, %v378
      %v380 = vand.u32 %v195, 4294901760
      %v381 = vsub.f32 %v195, %v380
      %382 = vmatmul.f32.gmra.mxu0 %v381
      %v383 = vpop.f32.mrf.mxu0
      %v384 = vadd.f32 %v330, %v383
      %v385 = vand.u32 %v198, 4294901760
      %v386 = vsub.f32 %v198, %v385
      %387 = vmatmul.f32.gmra.mxu0 %v386
      %v388 = vpop.f32.mrf.mxu0
      %v389 = vadd.f32 %v334, %v388
      %v390 = vand.u32 %v201, 4294901760
      %v391 = vsub.f32 %v201, %v390
      %392 = vmatmul.f32.gmra.mxu0 %v391
      %v393 = vpop.f32.mrf.mxu0
      %v394 = vadd.f32 %v338, %v393
      %v395 = vand.u32 %v204, 4294901760
      %v396 = vsub.f32 %v204, %v395
      %397 = vmatmul.f32.gmra.mxu0 %v396
      %v398 = vpop.f32.mrf.mxu0
      %v399 = vadd.f32 %v342, %v398
      %v400 = vand.u32 %v207, 4294901760
      %v401 = vsub.f32 %v207, %v400
      %402 = vmatmul.f32.gmra.mxu0 %v401
      %v403 = vpop.f32.mrf.mxu0
      %v404 = vadd.f32 %v346, %v403
      %v405 = vand.u32 %v210, 4294901760
      %v406 = vsub.f32 %v210, %v405
      %407 = vmatmul.f32.gmra.mxu0 %v406
      %v408 = vpop.f32.mrf.mxu0
      %v409 = vadd.f32 %v350, %v408
      %410 = vdwg.mxu0
      %411 = vmatpush.msra.mxu0 0.0
      %412 = vmatpush.msra.mxu0 0.0
      %413 = vmatpush.msra.mxu0 0.0
      %414 = vmatpush.msra.mxu0 0.0
      %415 = vmatpush.msra.mxu0 0.0
      %416 = vmatpush.msra.mxu0 0.0
      %417 = vmatpush.msra.mxu0 0.0
      %418 = vmatpush.msra.mxu0 0.0
      %419 = vmatpush.msra.mxu0 0.0
      %420 = vmatpush.msra.mxu0 0.0
      %421 = vmatpush.msra.mxu0 0.0
      %422 = vmatpush.msra.mxu0 0.0
      %423 = vmatpush.msra.mxu0 0.0
      %424 = vmatpush.msra.mxu0 0.0
      %425 = vmatpush.msra.mxu0 0.0
      %v426 = vand.u32 %v214, 4294901760
      %427 = vmatpush.msra.mxu0 %v426
      %v428 = vand.u32 %v189, 4294901760
      %v429 = vsub.f32 %v189, %v428
      %v430 = vand.u32 %v429, 4294901760
      %431 = vmatmul.f32.gmra.mxu0 %v430
      %v432 = vpop.f32.mrf.mxu0
      %v433 = vadd.f32 %v374, %v432
      %v434 = vand.u32 %v192, 4294901760
      %v435 = vsub.f32 %v192, %v434
      %v436 = vand.u32 %v435, 4294901760
      %437 = vmatmul.f32.gmra.mxu0 %v436
      %v438 = vpop.f32.mrf.mxu0
      %v439 = vadd.f32 %v379, %v438
      %v440 = vand.u32 %v195, 4294901760
      %v441 = vsub.f32 %v195, %v440
      %v442 = vand.u32 %v441, 4294901760
      %443 = vmatmul.f32.gmra.mxu0 %v442
      %v444 = vpop.f32.mrf.mxu0
      %v445 = vadd.f32 %v384, %v444
      %v446 = vand.u32 %v198, 4294901760
      %v447 = vsub.f32 %v198, %v446
      %v448 = vand.u32 %v447, 4294901760
      %449 = vmatmul.f32.gmra.mxu0 %v448
      %v450 = vpop.f32.mrf.mxu0
      %v451 = vadd.f32 %v389, %v450
      %v452 = vand.u32 %v201, 4294901760
      %v453 = vsub.f32 %v201, %v452
      %v454 = vand.u32 %v453, 4294901760
      %455 = vmatmul.f32.gmra.mxu0 %v454
      %v456 = vpop.f32.mrf.mxu0
      %v457 = vadd.f32 %v394, %v456
      %v458 = vand.u32 %v204, 4294901760
      %v459 = vsub.f32 %v204, %v458
      %v460 = vand.u32 %v459, 4294901760
      %461 = vmatmul.f32.gmra.mxu0 %v460
      %v462 = vpop.f32.mrf.mxu0
      %v463 = vadd.f32 %v399, %v462
      %v464 = vand.u32 %v207, 4294901760
      %v465 = vsub.f32 %v207, %v464
      %v466 = vand.u32 %v465, 4294901760
      %467 = vmatmul.f32.gmra.mxu0 %v466
      %v468 = vpop.f32.mrf.mxu0
      %v469 = vadd.f32 %v404, %v468
      %v470 = vand.u32 %v210, 4294901760
      %v471 = vsub.f32 %v210, %v470
      %v472 = vand.u32 %v471, 4294901760
      %473 = vmatmul.f32.gmra.mxu0 %v472
      %v474 = vpop.f32.mrf.mxu0
      %v475 = vadd.f32 %v409, %v474
      %476 = vdwg.mxu0
      %477 = vmatpush.msra.mxu0 0.0
      %478 = vmatpush.msra.mxu0 0.0
      %479 = vmatpush.msra.mxu0 0.0
      %480 = vmatpush.msra.mxu0 0.0
      %481 = vmatpush.msra.mxu0 0.0
      %482 = vmatpush.msra.mxu0 0.0
      %483 = vmatpush.msra.mxu0 0.0
      %484 = vmatpush.msra.mxu0 0.0
      %485 = vmatpush.msra.mxu0 0.0
      %486 = vmatpush.msra.mxu0 0.0
      %487 = vmatpush.msra.mxu0 0.0
      %488 = vmatpush.msra.mxu0 0.0
      %489 = vmatpush.msra.mxu0 0.0
      %490 = vmatpush.msra.mxu0 0.0
      %491 = vmatpush.msra.mxu0 0.0
      %v492 = vand.u32 %v214, 4294901760
      %v493 = vsub.f32 %v214, %v492
      %v494 = vand.u32 %v493, 4294901760
      %495 = vmatpush.msra.mxu0 %v494
      %v496 = vand.u32 %v189, 4294901760
      %497 = vmatmul.f32.gmra.mxu0 %v496
      %v498 = vpop.f32.mrf.mxu0
      %v499 = vadd.f32 %v433, %v498
      %v500 = vand.u32 %v192, 4294901760
      %501 = vmatmul.f32.gmra.mxu0 %v500
      %v502 = vpop.f32.mrf.mxu0
      %v503 = vadd.f32 %v439, %v502
      %v504 = vand.u32 %v195, 4294901760
      %505 = vmatmul.f32.gmra.mxu0 %v504
      %v506 = vpop.f32.mrf.mxu0
      %v507 = vadd.f32 %v445, %v506
      %v508 = vand.u32 %v198, 4294901760
      %509 = vmatmul.f32.gmra.mxu0 %v508
      %v510 = vpop.f32.mrf.mxu0
      %v511 = vadd.f32 %v451, %v510
      %v512 = vand.u32 %v201, 4294901760
      %513 = vmatmul.f32.gmra.mxu0 %v512
      %v514 = vpop.f32.mrf.mxu0
      %v515 = vadd.f32 %v457, %v514
      %v516 = vand.u32 %v204, 4294901760
      %517 = vmatmul.f32.gmra.mxu0 %v516
      %v518 = vpop.f32.mrf.mxu0
      %v519 = vadd.f32 %v463, %v518
      %v520 = vand.u32 %v207, 4294901760
      %521 = vmatmul.f32.gmra.mxu0 %v520
      %v522 = vpop.f32.mrf.mxu0
      %v523 = vadd.f32 %v469, %v522
      %v524 = vand.u32 %v210, 4294901760
      %525 = vmatmul.f32.gmra.mxu0 %v524
      %v526 = vpop.f32.mrf.mxu0
      %v527 = vadd.f32 %v475, %v526
      %528 = vdwg.mxu0
      %529 = vmatpush.msra.mxu0 0.0
      %530 = vmatpush.msra.mxu0 0.0
      %531 = vmatpush.msra.mxu0 0.0
      %532 = vmatpush.msra.mxu0 0.0
      %533 = vmatpush.msra.mxu0 0.0
      %534 = vmatpush.msra.mxu0 0.0
      %535 = vmatpush.msra.mxu0 0.0
      %536 = vmatpush.msra.mxu0 0.0
      %537 = vmatpush.msra.mxu0 0.0
      %538 = vmatpush.msra.mxu0 0.0
      %539 = vmatpush.msra.mxu0 0.0
      %540 = vmatpush.msra.mxu0 0.0
      %541 = vmatpush.msra.mxu0 0.0
      %542 = vmatpush.msra.mxu0 0.0
      %543 = vmatpush.msra.mxu0 0.0
      %v544 = vand.u32 %v214, 4294901760
      %545 = vmatpush.msra.mxu0 %v544
      %v546 = vand.u32 %v189, 4294901760
      %547 = vmatmul.f32.gmra.mxu0 %v546
      %v548 = vpop.f32.mrf.mxu0
      %v549 = vadd.f32 %v499, %v548
      %v550 = vand.u32 %v192, 4294901760
      %551 = vmatmul.f32.gmra.mxu0 %v550
      %v552 = vpop.f32.mrf.mxu0
      %v553 = vadd.f32 %v503, %v552
      %v554 = vand.u32 %v195, 4294901760
      %555 = vmatmul.f32.gmra.mxu0 %v554
      %v556 = vpop.f32.mrf.mxu0
      %v557 = vadd.f32 %v507, %v556
      %v558 = vand.u32 %v198, 4294901760
      %559 = vmatmul.f32.gmra.mxu0 %v558
      %v560 = vpop.f32.mrf.mxu0
      %v561 = vadd.f32 %v511, %v560
      %v562 = vand.u32 %v201, 4294901760
      %563 = vmatmul.f32.gmra.mxu0 %v562
      %v564 = vpop.f32.mrf.mxu0
      %v565 = vadd.f32 %v515, %v564
      %v566 = vand.u32 %v204, 4294901760
      %567 = vmatmul.f32.gmra.mxu0 %v566
      %v568 = vpop.f32.mrf.mxu0
      %v569 = vadd.f32 %v519, %v568
      %v570 = vand.u32 %v207, 4294901760
      %571 = vmatmul.f32.gmra.mxu0 %v570
      %v572 = vpop.f32.mrf.mxu0
      %v573 = vadd.f32 %v523, %v572
      %v574 = vand.u32 %v210, 4294901760
      %575 = vmatmul.f32.gmra.mxu0 %v574
      %v576 = vpop.f32.mrf.mxu0
      %v577 = vadd.f32 %v527, %v576
      %578 = vdwg.mxu0
      %v579 = vand.u32 2147483647, %v549
      %vm580 = vcmp.le.f32.partialorder %v579, 0.7853982
      %vm581 = vcmp.lt.s32.totalorder %v549, 0
      %v582 = vand.u32 %v549, 2139095040
      %v583 = vshrl.u32 %v582, 23
      %v584 = vsub.s32 %v583, 127
      %v585 = vand.u32 2147483647, %v549
      %v586 = vand.u32 %v585, 8388607
      %v587 = vor.u32 %v586, 8388608
      %v588 = vsub.s32 0, %v587
      %v589 = vadd.s32 %v584, 1
      %vm590 = vcmp.gt.s32.totalorder %v589, 0
      %v591 = vsel %vm590, %v589, 0
      %v592 = vshrl.u32 %v591, 5
      %v593 = vand.u32 %v591, 31
      %v594 = vsub.s32 32, %v593
      %v595 = vshrl.u32 683565275, %v594
      %v596 = vshll.u32 683565275, %v593
      %v597 = vshrl.u32 2475754826, %v594
      %v598 = vor.u32 %v596, %v597
      %v599 = vshll.u32 2475754826, %v593
      %v600 = vshrl.u32 2131351028, %v594
      %v601 = vor.u32 %v599, %v600
      %v602 = vshll.u32 2131351028, %v593
      %v603 = vshrl.u32 2102212464, %v594
      %v604 = vor.u32 %v602, %v603
      %v605 = vshll.u32 2102212464, %v593
      %v606 = vshrl.u32 920167782, %v594
      %v607 = vor.u32 %v605, %v606
      %v608 = vshll.u32 920167782, %v593
      %v609 = vshrl.u32 1326507024, %v594
      %v610 = vor.u32 %v608, %v609
      %vm611 = vcmp.lt.s32.totalorder %v592, 1
      %vm612 = vcmp.lt.s32.totalorder %v592, 2
      %vm613 = vcmp.lt.s32.totalorder %v592, 3
      %vm614 = vcmp.lt.s32.totalorder %v592, 4
      %v615 = vsel %vm611, %v595, %v598
      %v616 = vsel %vm614, %v604, 2102212464
      %v617 = vsel %vm613, %v601, %v616
      %v618 = vsel %vm612, %v615, %v617
      %v619 = vsel %vm611, %v598, %v601
      %v620 = vsel %vm614, %v607, 920167782
      %v621 = vsel %vm613, %v604, %v620
      %v622 = vsel %vm612, %v619, %v621
      %v623 = vsel %vm611, %v601, %v604
      %v624 = vsel %vm614, %v610, 1326507024
      %v625 = vsel %vm613, %v607, %v624
      %v626 = vsel %vm612, %v623, %v625
      %v627 = vshll.u32 %v587, 8
      %v628 = vand.u32 %v627, 65535
      %v629 = vshrl.u32 %v627, 16
      %v630 = vand.u32 %v626, 65535
      %v631 = vshrl.u32 %v626, 16
      %v632 = vmul.u32 %v628, %v630
      %v633 = vmul.u32 %v628, %v631
      %v634 = vmul.u32 %v629, %v630
      %v635 = vmul.u32 %v629, %v631
      %v636 = vshll.u32 %v633, 16
      %v637 = vshrl.u32 %v633, 16
      %v638 = vshll.u32 %v634, 16
      %v639 = vshrl.u32 %v634, 16
      %vm640 = vc.u32 %v632, %v636
      %v641 = vsel %vm640, 1, 0
      %v642 = vadd.s32 %v632, %v636
      %v643 = vadd.s32 %v635, %v641
      %vm644 = vc.u32 %v642, %v638
      %v645 = vsel %vm644, 1, 0
      %v646 = vadd.s32 %v642, %v638
      %v647 = vadd.s32 %v643, %v645
      %v648 = vadd.s32 %v647, %v637
      %v649 = vadd.s32 %v648, %v639
      %v650 = vand.u32 %v627, 65535
      %v651 = vshrl.u32 %v627, 16
      %v652 = vand.u32 %v622, 65535
      %v653 = vshrl.u32 %v622, 16
      %v654 = vmul.u32 %v650, %v652
      %v655 = vmul.u32 %v650, %v653
      %v656 = vmul.u32 %v651, %v652
      %v657 = vmul.u32 %v651, %v653
      %v658 = vshll.u32 %v655, 16
      %v659 = vshrl.u32 %v655, 16
      %v660 = vshll.u32 %v656, 16
      %v661 = vshrl.u32 %v656, 16
      %vm662 = vc.u32 %v654, %v658
      %v663 = vsel %vm662, 1, 0
      %v664 = vadd.s32 %v654, %v658
      %v665 = vadd.s32 %v657, %v663
      %vm666 = vc.u32 %v664, %v660
      %v667 = vsel %vm666, 1, 0
      %v668 = vadd.s32 %v664, %v660
      %v669 = vadd.s32 %v665, %v667
      %v670 = vadd.s32 %v669, %v659
      %v671 = vadd.s32 %v670, %v661
      %v672 = vmul.u32 %v627, %v618
      %v673 = vadd.s32 %v649, %v668
      %vm674 = vc.u32 %v649, %v668
      %v675 = vadd.s32 %v671, 1
      %v676 = vsel %vm674, %v675, %v671
      %v677 = vadd.s32 %v672, %v676
      %v678 = vadd.s32 %v677, 536870912
      %v679 = vshrl.u32 %v678, 30
      %v680 = vshll.u32 %v679, 30
      %v681 = vsub.s32 %v677, %v680
      %vm682 = vcmp.lt.s32.totalorder %v681, 0
      %v683 = vsub.s32 0, %v681
      %v684 = vsel %vm682, %v683, %v681
      %v685 = vclz %v684
      %v686 = vsub.s32 %v685, 2
      %vm687 = vcmp.gt.s32.totalorder 0, %v686
      %v688 = vsel %vm687, 0, %v686
      %v689 = vsub.s32 32, %v688
      %v690 = vshll.u32 %v681, %v688
      %v691 = vshrl.u32 %v673, %v689
      %v692 = vor.u32 %v690, %v691
      %v693 = vsub.s32 4294967266, %v688
      %v694 = vadd.s32 %v693, 127
      %v695 = vshll.u32 %v694, 23
      %v696 = vor.u32 4788187, %v695
      %v697 = vand.u32 2147483647, %v696
      %v699 = vcvt.s32.f32 %v692
      %v700 = vmul.f32 %v699, %v697
      %v701 = vxor.u32 %v700, 2147483648
      %v702 = vsel %vm581, %v701, %v700
      %v703 = vsub.s32 4, %v679
      %v704 = vsel %vm581, %v703, %v679
      %v705 = vsel %vm580, %v549, %v702
      %v706 = vsel %vm580, 0, %v704
      %v707 = vmul.f32 %v705, %v705
      %v708 = vmul.f32 %v707, -0.001358992
      %v709 = vadd.f32 %v708, 0.041655596
      %v710 = vmul.f32 %v707, %v709
      %v711 = vadd.f32 %v710, -0.4999988
      %v712 = vmul.f32 %v707, %v711
      %v713 = vadd.f32 1.0, %v712
      %v714 = vmul.f32 %v705, %v705
      %v715 = vmul.f32 %v714, -0.00019511016
      %v716 = vadd.f32 %v715, 0.008332121
      %v717 = vmul.f32 %v714, %v716
      %v718 = vadd.f32 %v717, -0.16666654
      %v719 = vmul.f32 %v714, %v718
      %v720 = vadd.f32 %v719, 1.0
      %v721 = vmul.f32 %v720, %v705
      %vm722 = vweird.f32 %v549
      %v723 = vadd.s32 %v706, 3
      %v724 = vand.u32 %v723, 3
      %vm725 = vcmp.lt.s32.totalorder %v724, 2
      %vm726 = vcmp.eq.s32.totalorder %v724, 0
      %v727 = vxor.u32 %v721, 2147483648
      %v728 = vsel %vm726, %v713, %v727
      %vm729 = vcmp.eq.s32.totalorder %v724, 2
      %v730 = vxor.u32 %v713, 2147483648
      %v731 = vsel %vm729, %v730, %v721
      %v732 = vsel %vm725, %v728, %v731
      %v733 = vsel %vm722, nan, %v732
      %v734 = vand.u32 2147483647, %v553
      %vm735 = vcmp.le.f32.partialorder %v734, 0.7853982
      %vm736 = vcmp.lt.s32.totalorder %v553, 0
      %v737 = vand.u32 %v553, 2139095040
      %v738 = vshrl.u32 %v737, 23
      %v739 = vsub.s32 %v738, 127
      %v740 = vand.u32 2147483647, %v553
      %v741 = vand.u32 %v740, 8388607
      %v742 = vor.u32 %v741, 8388608
      %v743 = vsub.s32 0, %v742
      %v744 = vadd.s32 %v739, 1
      %vm745 = vcmp.gt.s32.totalorder %v744, 0
      %v746 = vsel %vm745, %v744, 0
      %v747 = vshrl.u32 %v746, 5
      %v748 = vand.u32 %v746, 31
      %v749 = vsub.s32 32, %v748
      %v750 = vshrl.u32 683565275, %v749
      %v751 = vshll.u32 683565275, %v748
      %v752 = vshrl.u32 2475754826, %v749
      %v753 = vor.u32 %v751, %v752
      %v754 = vshll.u32 2475754826, %v748
      %v755 = vshrl.u32 2131351028, %v749
      %v756 = vor.u32 %v754, %v755
      %v757 = vshll.u32 2131351028, %v748
      %v758 = vshrl.u32 2102212464, %v749
      %v759 = vor.u32 %v757, %v758
      %v760 = vshll.u32 2102212464, %v748
      %v761 = vshrl.u32 920167782, %v749
      %v762 = vor.u32 %v760, %v761
      %v763 = vshll.u32 920167782, %v748
      %v764 = vshrl.u32 1326507024, %v749
      %v765 = vor.u32 %v763, %v764
      %vm766 = vcmp.lt.s32.totalorder %v747, 1
      %vm767 = vcmp.lt.s32.totalorder %v747, 2
      %vm768 = vcmp.lt.s32.totalorder %v747, 3
      %vm769 = vcmp.lt.s32.totalorder %v747, 4
      %v770 = vsel %vm766, %v750, %v753
      %v771 = vsel %vm769, %v759, 2102212464
      %v772 = vsel %vm768, %v756, %v771
      %v773 = vsel %vm767, %v770, %v772
      %v774 = vsel %vm766, %v753, %v756
      %v775 = vsel %vm769, %v762, 920167782
      %v776 = vsel %vm768, %v759, %v775
      %v777 = vsel %vm767, %v774, %v776
      %v778 = vsel %vm766, %v756, %v759
      %v779 = vsel %vm769, %v765, 1326507024
      %v780 = vsel %vm768, %v762, %v779
      %v781 = vsel %vm767, %v778, %v780
      %v782 = vshll.u32 %v742, 8
      %v783 = vand.u32 %v782, 65535
      %v784 = vshrl.u32 %v782, 16
      %v785 = vand.u32 %v781, 65535
      %v786 = vshrl.u32 %v781, 16
      %v787 = vmul.u32 %v783, %v785
      %v788 = vmul.u32 %v783, %v786
      %v789 = vmul.u32 %v784, %v785
      %v790 = vmul.u32 %v784, %v786
      %v791 = vshll.u32 %v788, 16
      %v792 = vshrl.u32 %v788, 16
      %v793 = vshll.u32 %v789, 16
      %v794 = vshrl.u32 %v789, 16
      %vm795 = vc.u32 %v787, %v791
      %v796 = vsel %vm795, 1, 0
      %v797 = vadd.s32 %v787, %v791
      %v798 = vadd.s32 %v790, %v796
      %vm799 = vc.u32 %v797, %v793
      %v800 = vsel %vm799, 1, 0
      %v801 = vadd.s32 %v797, %v793
      %v802 = vadd.s32 %v798, %v800
      %v803 = vadd.s32 %v802, %v792
      %v804 = vadd.s32 %v803, %v794
      %v805 = vand.u32 %v782, 65535
      %v806 = vshrl.u32 %v782, 16
      %v807 = vand.u32 %v777, 65535
      %v808 = vshrl.u32 %v777, 16
      %v809 = vmul.u32 %v805, %v807
      %v810 = vmul.u32 %v805, %v808
      %v811 = vmul.u32 %v806, %v807
      %v812 = vmul.u32 %v806, %v808
      %v813 = vshll.u32 %v810, 16
      %v814 = vshrl.u32 %v810, 16
      %v815 = vshll.u32 %v811, 16
      %v816 = vshrl.u32 %v811, 16
      %vm817 = vc.u32 %v809, %v813
      %v818 = vsel %vm817, 1, 0
      %v819 = vadd.s32 %v809, %v813
      %v820 = vadd.s32 %v812, %v818
      %vm821 = vc.u32 %v819, %v815
      %v822 = vsel %vm821, 1, 0
      %v823 = vadd.s32 %v819, %v815
      %v824 = vadd.s32 %v820, %v822
      %v825 = vadd.s32 %v824, %v814
      %v826 = vadd.s32 %v825, %v816
      %v827 = vmul.u32 %v782, %v773
      %v828 = vadd.s32 %v804, %v823
      %vm829 = vc.u32 %v804, %v823
      %v830 = vadd.s32 %v826, 1
      %v831 = vsel %vm829, %v830, %v826
      %v832 = vadd.s32 %v827, %v831
      %v833 = vadd.s32 %v832, 536870912
      %v834 = vshrl.u32 %v833, 30
      %v835 = vshll.u32 %v834, 30
      %v836 = vsub.s32 %v832, %v835
      %vm837 = vcmp.lt.s32.totalorder %v836, 0
      %v838 = vsub.s32 0, %v836
      %v839 = vsel %vm837, %v838, %v836
      %v840 = vclz %v839
      %v841 = vsub.s32 %v840, 2
      %vm842 = vcmp.gt.s32.totalorder 0, %v841
      %v843 = vsel %vm842, 0, %v841
      %v844 = vsub.s32 32, %v843
      %v845 = vshll.u32 %v836, %v843
      %v846 = vshrl.u32 %v828, %v844
      %v847 = vor.u32 %v845, %v846
      %v848 = vsub.s32 4294967266, %v843
      %v849 = vadd.s32 %v848, 127
      %v850 = vshll.u32 %v849, 23
      %v851 = vor.u32 4788187, %v850
      %v852 = vand.u32 2147483647, %v851
      %v854 = vcvt.s32.f32 %v847
      %v855 = vmul.f32 %v854, %v852
      %v856 = vxor.u32 %v855, 2147483648
      %v857 = vsel %vm736, %v856, %v855
      %v858 = vsub.s32 4, %v834
      %v859 = vsel %vm736, %v858, %v834
      %v860 = vsel %vm735, %v553, %v857
      %v861 = vsel %vm735, 0, %v859
      %v862 = vmul.f32 %v860, %v860
      %v863 = vmul.f32 %v862, -0.001358992
      %v864 = vadd.f32 %v863, 0.041655596
      %v865 = vmul.f32 %v862, %v864
      %v866 = vadd.f32 %v865, -0.4999988
      %v867 = vmul.f32 %v862, %v866
      %v868 = vadd.f32 1.0, %v867
      %v869 = vmul.f32 %v860, %v860
      %v870 = vmul.f32 %v869, -0.00019511016
      %v871 = vadd.f32 %v870, 0.008332121
      %v872 = vmul.f32 %v869, %v871
      %v873 = vadd.f32 %v872, -0.16666654
      %v874 = vmul.f32 %v869, %v873
      %v875 = vadd.f32 %v874, 1.0
      %v876 = vmul.f32 %v875, %v860
      %vm877 = vweird.f32 %v553
      %v878 = vadd.s32 %v861, 3
      %v879 = vand.u32 %v878, 3
      %vm880 = vcmp.lt.s32.totalorder %v879, 2
      %vm881 = vcmp.eq.s32.totalorder %v879, 0
      %v882 = vxor.u32 %v876, 2147483648
      %v883 = vsel %vm881, %v868, %v882
      %vm884 = vcmp.eq.s32.totalorder %v879, 2
      %v885 = vxor.u32 %v868, 2147483648
      %v886 = vsel %vm884, %v885, %v876
      %v887 = vsel %vm880, %v883, %v886
      %v888 = vsel %vm877, nan, %v887
      %v889 = vand.u32 2147483647, %v557
      %vm890 = vcmp.le.f32.partialorder %v889, 0.7853982
      %vm891 = vcmp.lt.s32.totalorder %v557, 0
      %v892 = vand.u32 %v557, 2139095040
      %v893 = vshrl.u32 %v892, 23
      %v894 = vsub.s32 %v893, 127
      %v895 = vand.u32 2147483647, %v557
      %v896 = vand.u32 %v895, 8388607
      %v897 = vor.u32 %v896, 8388608
      %v898 = vsub.s32 0, %v897
      %v899 = vadd.s32 %v894, 1
      %vm900 = vcmp.gt.s32.totalorder %v899, 0
      %v901 = vsel %vm900, %v899, 0
      %v902 = vshrl.u32 %v901, 5
      %v903 = vand.u32 %v901, 31
      %v904 = vsub.s32 32, %v903
      %v905 = vshrl.u32 683565275, %v904
      %v906 = vshll.u32 683565275, %v903
      %v907 = vshrl.u32 2475754826, %v904
      %v908 = vor.u32 %v906, %v907
      %v909 = vshll.u32 2475754826, %v903
      %v910 = vshrl.u32 2131351028, %v904
      %v911 = vor.u32 %v909, %v910
      %v912 = vshll.u32 2131351028, %v903
      %v913 = vshrl.u32 2102212464, %v904
      %v914 = vor.u32 %v912, %v913
      %v915 = vshll.u32 2102212464, %v903
      %v916 = vshrl.u32 920167782, %v904
      %v917 = vor.u32 %v915, %v916
      %v918 = vshll.u32 920167782, %v903
      %v919 = vshrl.u32 1326507024, %v904
      %v920 = vor.u32 %v918, %v919
      %vm921 = vcmp.lt.s32.totalorder %v902, 1
      %vm922 = vcmp.lt.s32.totalorder %v902, 2
      %vm923 = vcmp.lt.s32.totalorder %v902, 3
      %vm924 = vcmp.lt.s32.totalorder %v902, 4
      %v925 = vsel %vm921, %v905, %v908
      %v926 = vsel %vm924, %v914, 2102212464
      %v927 = vsel %vm923, %v911, %v926
      %v928 = vsel %vm922, %v925, %v927
      %v929 = vsel %vm921, %v908, %v911
      %v930 = vsel %vm924, %v917, 920167782
      %v931 = vsel %vm923, %v914, %v930
      %v932 = vsel %vm922, %v929, %v931
      %v933 = vsel %vm921, %v911, %v914
      %v934 = vsel %vm924, %v920, 1326507024
      %v935 = vsel %vm923, %v917, %v934
      %v936 = vsel %vm922, %v933, %v935
      %v937 = vshll.u32 %v897, 8
      %v938 = vand.u32 %v937, 65535
      %v939 = vshrl.u32 %v937, 16
      %v940 = vand.u32 %v936, 65535
      %v941 = vshrl.u32 %v936, 16
      %v942 = vmul.u32 %v938, %v940
      %v943 = vmul.u32 %v938, %v941
      %v944 = vmul.u32 %v939, %v940
      %v945 = vmul.u32 %v939, %v941
      %v946 = vshll.u32 %v943, 16
      %v947 = vshrl.u32 %v943, 16
      %v948 = vshll.u32 %v944, 16
      %v949 = vshrl.u32 %v944, 16
      %vm950 = vc.u32 %v942, %v946
      %v951 = vsel %vm950, 1, 0
      %v952 = vadd.s32 %v942, %v946
      %v953 = vadd.s32 %v945, %v951
      %vm954 = vc.u32 %v952, %v948
      %v955 = vsel %vm954, 1, 0
      %v956 = vadd.s32 %v952, %v948
      %v957 = vadd.s32 %v953, %v955
      %v958 = vadd.s32 %v957, %v947
      %v959 = vadd.s32 %v958, %v949
      %v960 = vand.u32 %v937, 65535
      %v961 = vshrl.u32 %v937, 16
      %v962 = vand.u32 %v932, 65535
      %v963 = vshrl.u32 %v932, 16
      %v964 = vmul.u32 %v960, %v962
      %v965 = vmul.u32 %v960, %v963
      %v966 = vmul.u32 %v961, %v962
      %v967 = vmul.u32 %v961, %v963
      %v968 = vshll.u32 %v965, 16
      %v969 = vshrl.u32 %v965, 16
      %v970 = vshll.u32 %v966, 16
      %v971 = vshrl.u32 %v966, 16
      %vm972 = vc.u32 %v964, %v968
      %v973 = vsel %vm972, 1, 0
      %v974 = vadd.s32 %v964, %v968
      %v975 = vadd.s32 %v967, %v973
      %vm976 = vc.u32 %v974, %v970
      %v977 = vsel %vm976, 1, 0
      %v978 = vadd.s32 %v974, %v970
      %v979 = vadd.s32 %v975, %v977
      %v980 = vadd.s32 %v979, %v969
      %v981 = vadd.s32 %v980, %v971
      %v982 = vmul.u32 %v937, %v928
      %v983 = vadd.s32 %v959, %v978
      %vm984 = vc.u32 %v959, %v978
      %v985 = vadd.s32 %v981, 1
      %v986 = vsel %vm984, %v985, %v981
      %v987 = vadd.s32 %v982, %v986
      %v988 = vadd.s32 %v987, 536870912
      %v989 = vshrl.u32 %v988, 30
      %v990 = vshll.u32 %v989, 30
      %v991 = vsub.s32 %v987, %v990
      %vm992 = vcmp.lt.s32.totalorder %v991, 0
      %v993 = vsub.s32 0, %v991
      %v994 = vsel %vm992, %v993, %v991
      %v995 = vclz %v994
      %v996 = vsub.s32 %v995, 2
      %vm997 = vcmp.gt.s32.totalorder 0, %v996
      %v998 = vsel %vm997, 0, %v996
      %v999 = vsub.s32 32, %v998
      %v1000 = vshll.u32 %v991, %v998
      %v1001 = vshrl.u32 %v983, %v999
      %v1002 = vor.u32 %v1000, %v1001
      %v1003 = vsub.s32 4294967266, %v998
      %v1004 = vadd.s32 %v1003, 127
      %v1005 = vshll.u32 %v1004, 23
      %v1006 = vor.u32 4788187, %v1005
      %v1007 = vand.u32 2147483647, %v1006
      %v1009 = vcvt.s32.f32 %v1002
      %v1010 = vmul.f32 %v1009, %v1007
      %v1011 = vxor.u32 %v1010, 2147483648
      %v1012 = vsel %vm891, %v1011, %v1010
      %v1013 = vsub.s32 4, %v989
      %v1014 = vsel %vm891, %v1013, %v989
      %v1015 = vsel %vm890, %v557, %v1012
      %v1016 = vsel %vm890, 0, %v1014
      %v1017 = vmul.f32 %v1015, %v1015
      %v1018 = vmul.f32 %v1017, -0.001358992
      %v1019 = vadd.f32 %v1018, 0.041655596
      %v1020 = vmul.f32 %v1017, %v1019
      %v1021 = vadd.f32 %v1020, -0.4999988
      %v1022 = vmul.f32 %v1017, %v1021
      %v1023 = vadd.f32 1.0, %v1022
      %v1024 = vmul.f32 %v1015, %v1015
      %v1025 = vmul.f32 %v1024, -0.00019511016
      %v1026 = vadd.f32 %v1025, 0.008332121
      %v1027 = vmul.f32 %v1024, %v1026
      %v1028 = vadd.f32 %v1027, -0.16666654
      %v1029 = vmul.f32 %v1024, %v1028
      %v1030 = vadd.f32 %v1029, 1.0
      %v1031 = vmul.f32 %v1030, %v1015
      %vm1032 = vweird.f32 %v557
      %v1033 = vadd.s32 %v1016, 3
      %v1034 = vand.u32 %v1033, 3
      %vm1035 = vcmp.lt.s32.totalorder %v1034, 2
      %vm1036 = vcmp.eq.s32.totalorder %v1034, 0
      %v1037 = vxor.u32 %v1031, 2147483648
      %v1038 = vsel %vm1036, %v1023, %v1037
      %vm1039 = vcmp.eq.s32.totalorder %v1034, 2
      %v1040 = vxor.u32 %v1023, 2147483648
      %v1041 = vsel %vm1039, %v1040, %v1031
      %v1042 = vsel %vm1035, %v1038, %v1041
      %v1043 = vsel %vm1032, nan, %v1042
      %v1044 = vand.u32 2147483647, %v561
      %vm1045 = vcmp.le.f32.partialorder %v1044, 0.7853982
      %vm1046 = vcmp.lt.s32.totalorder %v561, 0
      %v1047 = vand.u32 %v561, 2139095040
      %v1048 = vshrl.u32 %v1047, 23
      %v1049 = vsub.s32 %v1048, 127
      %v1050 = vand.u32 2147483647, %v561
      %v1051 = vand.u32 %v1050, 8388607
      %v1052 = vor.u32 %v1051, 8388608
      %v1053 = vsub.s32 0, %v1052
      %v1054 = vadd.s32 %v1049, 1
      %vm1055 = vcmp.gt.s32.totalorder %v1054, 0
      %v1056 = vsel %vm1055, %v1054, 0
      %v1057 = vshrl.u32 %v1056, 5
      %v1058 = vand.u32 %v1056, 31
      %v1059 = vsub.s32 32, %v1058
      %v1060 = vshrl.u32 683565275, %v1059
      %v1061 = vshll.u32 683565275, %v1058
      %v1062 = vshrl.u32 2475754826, %v1059
      %v1063 = vor.u32 %v1061, %v1062
      %v1064 = vshll.u32 2475754826, %v1058
      %v1065 = vshrl.u32 2131351028, %v1059
      %v1066 = vor.u32 %v1064, %v1065
      %v1067 = vshll.u32 2131351028, %v1058
      %v1068 = vshrl.u32 2102212464, %v1059
      %v1069 = vor.u32 %v1067, %v1068
      %v1070 = vshll.u32 2102212464, %v1058
      %v1071 = vshrl.u32 920167782, %v1059
      %v1072 = vor.u32 %v1070, %v1071
      %v1073 = vshll.u32 920167782, %v1058
      %v1074 = vshrl.u32 1326507024, %v1059
      %v1075 = vor.u32 %v1073, %v1074
      %vm1076 = vcmp.lt.s32.totalorder %v1057, 1
      %vm1077 = vcmp.lt.s32.totalorder %v1057, 2
      %vm1078 = vcmp.lt.s32.totalorder %v1057, 3
      %vm1079 = vcmp.lt.s32.totalorder %v1057, 4
      %v1080 = vsel %vm1076, %v1060, %v1063
      %v1081 = vsel %vm1079, %v1069, 2102212464
      %v1082 = vsel %vm1078, %v1066, %v1081
      %v1083 = vsel %vm1077, %v1080, %v1082
      %v1084 = vsel %vm1076, %v1063, %v1066
      %v1085 = vsel %vm1079, %v1072, 920167782
      %v1086 = vsel %vm1078, %v1069, %v1085
      %v1087 = vsel %vm1077, %v1084, %v1086
      %v1088 = vsel %vm1076, %v1066, %v1069
      %v1089 = vsel %vm1079, %v1075, 1326507024
      %v1090 = vsel %vm1078, %v1072, %v1089
      %v1091 = vsel %vm1077, %v1088, %v1090
      %v1092 = vshll.u32 %v1052, 8
      %v1093 = vand.u32 %v1092, 65535
      %v1094 = vshrl.u32 %v1092, 16
      %v1095 = vand.u32 %v1091, 65535
      %v1096 = vshrl.u32 %v1091, 16
      %v1097 = vmul.u32 %v1093, %v1095
      %v1098 = vmul.u32 %v1093, %v1096
      %v1099 = vmul.u32 %v1094, %v1095
      %v1100 = vmul.u32 %v1094, %v1096
      %v1101 = vshll.u32 %v1098, 16
      %v1102 = vshrl.u32 %v1098, 16
      %v1103 = vshll.u32 %v1099, 16
      %v1104 = vshrl.u32 %v1099, 16
      %vm1105 = vc.u32 %v1097, %v1101
      %v1106 = vsel %vm1105, 1, 0
      %v1107 = vadd.s32 %v1097, %v1101
      %v1108 = vadd.s32 %v1100, %v1106
      %vm1109 = vc.u32 %v1107, %v1103
      %v1110 = vsel %vm1109, 1, 0
      %v1111 = vadd.s32 %v1107, %v1103
      %v1112 = vadd.s32 %v1108, %v1110
      %v1113 = vadd.s32 %v1112, %v1102
      %v1114 = vadd.s32 %v1113, %v1104
      %v1115 = vand.u32 %v1092, 65535
      %v1116 = vshrl.u32 %v1092, 16
      %v1117 = vand.u32 %v1087, 65535
      %v1118 = vshrl.u32 %v1087, 16
      %v1119 = vmul.u32 %v1115, %v1117
      %v1120 = vmul.u32 %v1115, %v1118
      %v1121 = vmul.u32 %v1116, %v1117
      %v1122 = vmul.u32 %v1116, %v1118
      %v1123 = vshll.u32 %v1120, 16
      %v1124 = vshrl.u32 %v1120, 16
      %v1125 = vshll.u32 %v1121, 16
      %v1126 = vshrl.u32 %v1121, 16
      %vm1127 = vc.u32 %v1119, %v1123
      %v1128 = vsel %vm1127, 1, 0
      %v1129 = vadd.s32 %v1119, %v1123
      %v1130 = vadd.s32 %v1122, %v1128
      %vm1131 = vc.u32 %v1129, %v1125
      %v1132 = vsel %vm1131, 1, 0
      %v1133 = vadd.s32 %v1129, %v1125
      %v1134 = vadd.s32 %v1130, %v1132
      %v1135 = vadd.s32 %v1134, %v1124
      %v1136 = vadd.s32 %v1135, %v1126
      %v1137 = vmul.u32 %v1092, %v1083
      %v1138 = vadd.s32 %v1114, %v1133
      %vm1139 = vc.u32 %v1114, %v1133
      %v1140 = vadd.s32 %v1136, 1
      %v1141 = vsel %vm1139, %v1140, %v1136
      %v1142 = vadd.s32 %v1137, %v1141
      %v1143 = vadd.s32 %v1142, 536870912
      %v1144 = vshrl.u32 %v1143, 30
      %v1145 = vshll.u32 %v1144, 30
      %v1146 = vsub.s32 %v1142, %v1145
      %vm1147 = vcmp.lt.s32.totalorder %v1146, 0
      %v1148 = vsub.s32 0, %v1146
      %v1149 = vsel %vm1147, %v1148, %v1146
      %v1150 = vclz %v1149
      %v1151 = vsub.s32 %v1150, 2
      %vm1152 = vcmp.gt.s32.totalorder 0, %v1151
      %v1153 = vsel %vm1152, 0, %v1151
      %v1154 = vsub.s32 32, %v1153
      %v1155 = vshll.u32 %v1146, %v1153
      %v1156 = vshrl.u32 %v1138, %v1154
      %v1157 = vor.u32 %v1155, %v1156
      %v1158 = vsub.s32 4294967266, %v1153
      %v1159 = vadd.s32 %v1158, 127
      %v1160 = vshll.u32 %v1159, 23
      %v1161 = vor.u32 4788187, %v1160
      %v1162 = vand.u32 2147483647, %v1161
      %v1164 = vcvt.s32.f32 %v1157
      %v1165 = vmul.f32 %v1164, %v1162
      %v1166 = vxor.u32 %v1165, 2147483648
      %v1167 = vsel %vm1046, %v1166, %v1165
      %v1168 = vsub.s32 4, %v1144
      %v1169 = vsel %vm1046, %v1168, %v1144
      %v1170 = vsel %vm1045, %v561, %v1167
      %v1171 = vsel %vm1045, 0, %v1169
      %v1172 = vmul.f32 %v1170, %v1170
      %v1173 = vmul.f32 %v1172, -0.001358992
      %v1174 = vadd.f32 %v1173, 0.041655596
      %v1175 = vmul.f32 %v1172, %v1174
      %v1176 = vadd.f32 %v1175, -0.4999988
      %v1177 = vmul.f32 %v1172, %v1176
      %v1178 = vadd.f32 1.0, %v1177
      %v1179 = vmul.f32 %v1170, %v1170
      %v1180 = vmul.f32 %v1179, -0.00019511016
      %v1181 = vadd.f32 %v1180, 0.008332121
      %v1182 = vmul.f32 %v1179, %v1181
      %v1183 = vadd.f32 %v1182, -0.16666654
      %v1184 = vmul.f32 %v1179, %v1183
      %v1185 = vadd.f32 %v1184, 1.0
      %v1186 = vmul.f32 %v1185, %v1170
      %vm1187 = vweird.f32 %v561
      %v1188 = vadd.s32 %v1171, 3
      %v1189 = vand.u32 %v1188, 3
      %vm1190 = vcmp.lt.s32.totalorder %v1189, 2
      %vm1191 = vcmp.eq.s32.totalorder %v1189, 0
      %v1192 = vxor.u32 %v1186, 2147483648
      %v1193 = vsel %vm1191, %v1178, %v1192
      %vm1194 = vcmp.eq.s32.totalorder %v1189, 2
      %v1195 = vxor.u32 %v1178, 2147483648
      %v1196 = vsel %vm1194, %v1195, %v1186
      %v1197 = vsel %vm1190, %v1193, %v1196
      %v1198 = vsel %vm1187, nan, %v1197
      %v1199 = vand.u32 2147483647, %v565
      %vm1200 = vcmp.le.f32.partialorder %v1199, 0.7853982
      %vm1201 = vcmp.lt.s32.totalorder %v565, 0
      %v1202 = vand.u32 %v565, 2139095040
      %v1203 = vshrl.u32 %v1202, 23
      %v1204 = vsub.s32 %v1203, 127
      %v1205 = vand.u32 2147483647, %v565
      %v1206 = vand.u32 %v1205, 8388607
      %v1207 = vor.u32 %v1206, 8388608
      %v1208 = vsub.s32 0, %v1207
      %v1209 = vadd.s32 %v1204, 1
      %vm1210 = vcmp.gt.s32.totalorder %v1209, 0
      %v1211 = vsel %vm1210, %v1209, 0
      %v1212 = vshrl.u32 %v1211, 5
      %v1213 = vand.u32 %v1211, 31
      %v1214 = vsub.s32 32, %v1213
      %v1215 = vshrl.u32 683565275, %v1214
      %v1216 = vshll.u32 683565275, %v1213
      %v1217 = vshrl.u32 2475754826, %v1214
      %v1218 = vor.u32 %v1216, %v1217
      %v1219 = vshll.u32 2475754826, %v1213
      %v1220 = vshrl.u32 2131351028, %v1214
      %v1221 = vor.u32 %v1219, %v1220
      %v1222 = vshll.u32 2131351028, %v1213
      %v1223 = vshrl.u32 2102212464, %v1214
      %v1224 = vor.u32 %v1222, %v1223
      %v1225 = vshll.u32 2102212464, %v1213
      %v1226 = vshrl.u32 920167782, %v1214
      %v1227 = vor.u32 %v1225, %v1226
      %v1228 = vshll.u32 920167782, %v1213
      %v1229 = vshrl.u32 1326507024, %v1214
      %v1230 = vor.u32 %v1228, %v1229
      %vm1231 = vcmp.lt.s32.totalorder %v1212, 1
      %vm1232 = vcmp.lt.s32.totalorder %v1212, 2
      %vm1233 = vcmp.lt.s32.totalorder %v1212, 3
      %vm1234 = vcmp.lt.s32.totalorder %v1212, 4
      %v1235 = vsel %vm1231, %v1215, %v1218
      %v1236 = vsel %vm1234, %v1224, 2102212464
      %v1237 = vsel %vm1233, %v1221, %v1236
      %v1238 = vsel %vm1232, %v1235, %v1237
      %v1239 = vsel %vm1231, %v1218, %v1221
      %v1240 = vsel %vm1234, %v1227, 920167782
      %v1241 = vsel %vm1233, %v1224, %v1240
      %v1242 = vsel %vm1232, %v1239, %v1241
      %v1243 = vsel %vm1231, %v1221, %v1224
      %v1244 = vsel %vm1234, %v1230, 1326507024
      %v1245 = vsel %vm1233, %v1227, %v1244
      %v1246 = vsel %vm1232, %v1243, %v1245
      %v1247 = vshll.u32 %v1207, 8
      %v1248 = vand.u32 %v1247, 65535
      %v1249 = vshrl.u32 %v1247, 16
      %v1250 = vand.u32 %v1246, 65535
      %v1251 = vshrl.u32 %v1246, 16
      %v1252 = vmul.u32 %v1248, %v1250
      %v1253 = vmul.u32 %v1248, %v1251
      %v1254 = vmul.u32 %v1249, %v1250
      %v1255 = vmul.u32 %v1249, %v1251
      %v1256 = vshll.u32 %v1253, 16
      %v1257 = vshrl.u32 %v1253, 16
      %v1258 = vshll.u32 %v1254, 16
      %v1259 = vshrl.u32 %v1254, 16
      %vm1260 = vc.u32 %v1252, %v1256
      %v1261 = vsel %vm1260, 1, 0
      %v1262 = vadd.s32 %v1252, %v1256
      %v1263 = vadd.s32 %v1255, %v1261
      %vm1264 = vc.u32 %v1262, %v1258
      %v1265 = vsel %vm1264, 1, 0
      %v1266 = vadd.s32 %v1262, %v1258
      %v1267 = vadd.s32 %v1263, %v1265
      %v1268 = vadd.s32 %v1267, %v1257
      %v1269 = vadd.s32 %v1268, %v1259
      %v1270 = vand.u32 %v1247, 65535
      %v1271 = vshrl.u32 %v1247, 16
      %v1272 = vand.u32 %v1242, 65535
      %v1273 = vshrl.u32 %v1242, 16
      %v1274 = vmul.u32 %v1270, %v1272
      %v1275 = vmul.u32 %v1270, %v1273
      %v1276 = vmul.u32 %v1271, %v1272
      %v1277 = vmul.u32 %v1271, %v1273
      %v1278 = vshll.u32 %v1275, 16
      %v1279 = vshrl.u32 %v1275, 16
      %v1280 = vshll.u32 %v1276, 16
      %v1281 = vshrl.u32 %v1276, 16
      %vm1282 = vc.u32 %v1274, %v1278
      %v1283 = vsel %vm1282, 1, 0
      %v1284 = vadd.s32 %v1274, %v1278
      %v1285 = vadd.s32 %v1277, %v1283
      %vm1286 = vc.u32 %v1284, %v1280
      %v1287 = vsel %vm1286, 1, 0
      %v1288 = vadd.s32 %v1284, %v1280
      %v1289 = vadd.s32 %v1285, %v1287
      %v1290 = vadd.s32 %v1289, %v1279
      %v1291 = vadd.s32 %v1290, %v1281
      %v1292 = vmul.u32 %v1247, %v1238
      %v1293 = vadd.s32 %v1269, %v1288
      %vm1294 = vc.u32 %v1269, %v1288
      %v1295 = vadd.s32 %v1291, 1
      %v1296 = vsel %vm1294, %v1295, %v1291
      %v1297 = vadd.s32 %v1292, %v1296
      %v1298 = vadd.s32 %v1297, 536870912
      %v1299 = vshrl.u32 %v1298, 30
      %v1300 = vshll.u32 %v1299, 30
      %v1301 = vsub.s32 %v1297, %v1300
      %vm1302 = vcmp.lt.s32.totalorder %v1301, 0
      %v1303 = vsub.s32 0, %v1301
      %v1304 = vsel %vm1302, %v1303, %v1301
      %v1305 = vclz %v1304
      %v1306 = vsub.s32 %v1305, 2
      %vm1307 = vcmp.gt.s32.totalorder 0, %v1306
      %v1308 = vsel %vm1307, 0, %v1306
      %v1309 = vsub.s32 32, %v1308
      %v1310 = vshll.u32 %v1301, %v1308
      %v1311 = vshrl.u32 %v1293, %v1309
      %v1312 = vor.u32 %v1310, %v1311
      %v1313 = vsub.s32 4294967266, %v1308
      %v1314 = vadd.s32 %v1313, 127
      %v1315 = vshll.u32 %v1314, 23
      %v1316 = vor.u32 4788187, %v1315
      %v1317 = vand.u32 2147483647, %v1316
      %v1319 = vcvt.s32.f32 %v1312
      %v1320 = vmul.f32 %v1319, %v1317
      %v1321 = vxor.u32 %v1320, 2147483648
      %v1322 = vsel %vm1201, %v1321, %v1320
      %v1323 = vsub.s32 4, %v1299
      %v1324 = vsel %vm1201, %v1323, %v1299
      %v1325 = vsel %vm1200, %v565, %v1322
      %v1326 = vsel %vm1200, 0, %v1324
      %v1327 = vmul.f32 %v1325, %v1325
      %v1328 = vmul.f32 %v1327, -0.001358992
      %v1329 = vadd.f32 %v1328, 0.041655596
      %v1330 = vmul.f32 %v1327, %v1329
      %v1331 = vadd.f32 %v1330, -0.4999988
      %v1332 = vmul.f32 %v1327, %v1331
      %v1333 = vadd.f32 1.0, %v1332
      %v1334 = vmul.f32 %v1325, %v1325
      %v1335 = vmul.f32 %v1334, -0.00019511016
      %v1336 = vadd.f32 %v1335, 0.008332121
      %v1337 = vmul.f32 %v1334, %v1336
      %v1338 = vadd.f32 %v1337, -0.16666654
      %v1339 = vmul.f32 %v1334, %v1338
      %v1340 = vadd.f32 %v1339, 1.0
      %v1341 = vmul.f32 %v1340, %v1325
      %vm1342 = vweird.f32 %v565
      %v1343 = vadd.s32 %v1326, 3
      %v1344 = vand.u32 %v1343, 3
      %vm1345 = vcmp.lt.s32.totalorder %v1344, 2
      %vm1346 = vcmp.eq.s32.totalorder %v1344, 0
      %v1347 = vxor.u32 %v1341, 2147483648
      %v1348 = vsel %vm1346, %v1333, %v1347
      %vm1349 = vcmp.eq.s32.totalorder %v1344, 2
      %v1350 = vxor.u32 %v1333, 2147483648
      %v1351 = vsel %vm1349, %v1350, %v1341
      %v1352 = vsel %vm1345, %v1348, %v1351
      %v1353 = vsel %vm1342, nan, %v1352
      %v1354 = vand.u32 2147483647, %v569
      %vm1355 = vcmp.le.f32.partialorder %v1354, 0.7853982
      %vm1356 = vcmp.lt.s32.totalorder %v569, 0
      %v1357 = vand.u32 %v569, 2139095040
      %v1358 = vshrl.u32 %v1357, 23
      %v1359 = vsub.s32 %v1358, 127
      %v1360 = vand.u32 2147483647, %v569
      %v1361 = vand.u32 %v1360, 8388607
      %v1362 = vor.u32 %v1361, 8388608
      %v1363 = vsub.s32 0, %v1362
      %v1364 = vadd.s32 %v1359, 1
      %vm1365 = vcmp.gt.s32.totalorder %v1364, 0
      %v1366 = vsel %vm1365, %v1364, 0
      %v1367 = vshrl.u32 %v1366, 5
      %v1368 = vand.u32 %v1366, 31
      %v1369 = vsub.s32 32, %v1368
      %v1370 = vshrl.u32 683565275, %v1369
      %v1371 = vshll.u32 683565275, %v1368
      %v1372 = vshrl.u32 2475754826, %v1369
      %v1373 = vor.u32 %v1371, %v1372
      %v1374 = vshll.u32 2475754826, %v1368
      %v1375 = vshrl.u32 2131351028, %v1369
      %v1376 = vor.u32 %v1374, %v1375
      %v1377 = vshll.u32 2131351028, %v1368
      %v1378 = vshrl.u32 2102212464, %v1369
      %v1379 = vor.u32 %v1377, %v1378
      %v1380 = vshll.u32 2102212464, %v1368
      %v1381 = vshrl.u32 920167782, %v1369
      %v1382 = vor.u32 %v1380, %v1381
      %v1383 = vshll.u32 920167782, %v1368
      %v1384 = vshrl.u32 1326507024, %v1369
      %v1385 = vor.u32 %v1383, %v1384
      %vm1386 = vcmp.lt.s32.totalorder %v1367, 1
      %vm1387 = vcmp.lt.s32.totalorder %v1367, 2
      %vm1388 = vcmp.lt.s32.totalorder %v1367, 3
      %vm1389 = vcmp.lt.s32.totalorder %v1367, 4
      %v1390 = vsel %vm1386, %v1370, %v1373
      %v1391 = vsel %vm1389, %v1379, 2102212464
      %v1392 = vsel %vm1388, %v1376, %v1391
      %v1393 = vsel %vm1387, %v1390, %v1392
      %v1394 = vsel %vm1386, %v1373, %v1376
      %v1395 = vsel %vm1389, %v1382, 920167782
      %v1396 = vsel %vm1388, %v1379, %v1395
      %v1397 = vsel %vm1387, %v1394, %v1396
      %v1398 = vsel %vm1386, %v1376, %v1379
      %v1399 = vsel %vm1389, %v1385, 1326507024
      %v1400 = vsel %vm1388, %v1382, %v1399
      %v1401 = vsel %vm1387, %v1398, %v1400
      %v1402 = vshll.u32 %v1362, 8
      %v1403 = vand.u32 %v1402, 65535
      %v1404 = vshrl.u32 %v1402, 16
      %v1405 = vand.u32 %v1401, 65535
      %v1406 = vshrl.u32 %v1401, 16
      %v1407 = vmul.u32 %v1403, %v1405
      %v1408 = vmul.u32 %v1403, %v1406
      %v1409 = vmul.u32 %v1404, %v1405
      %v1410 = vmul.u32 %v1404, %v1406
      %v1411 = vshll.u32 %v1408, 16
      %v1412 = vshrl.u32 %v1408, 16
      %v1413 = vshll.u32 %v1409, 16
      %v1414 = vshrl.u32 %v1409, 16
      %vm1415 = vc.u32 %v1407, %v1411
      %v1416 = vsel %vm1415, 1, 0
      %v1417 = vadd.s32 %v1407, %v1411
      %v1418 = vadd.s32 %v1410, %v1416
      %vm1419 = vc.u32 %v1417, %v1413
      %v1420 = vsel %vm1419, 1, 0
      %v1421 = vadd.s32 %v1417, %v1413
      %v1422 = vadd.s32 %v1418, %v1420
      %v1423 = vadd.s32 %v1422, %v1412
      %v1424 = vadd.s32 %v1423, %v1414
      %v1425 = vand.u32 %v1402, 65535
      %v1426 = vshrl.u32 %v1402, 16
      %v1427 = vand.u32 %v1397, 65535
      %v1428 = vshrl.u32 %v1397, 16
      %v1429 = vmul.u32 %v1425, %v1427
      %v1430 = vmul.u32 %v1425, %v1428
      %v1431 = vmul.u32 %v1426, %v1427
      %v1432 = vmul.u32 %v1426, %v1428
      %v1433 = vshll.u32 %v1430, 16
      %v1434 = vshrl.u32 %v1430, 16
      %v1435 = vshll.u32 %v1431, 16
      %v1436 = vshrl.u32 %v1431, 16
      %vm1437 = vc.u32 %v1429, %v1433
      %v1438 = vsel %vm1437, 1, 0
      %v1439 = vadd.s32 %v1429, %v1433
      %v1440 = vadd.s32 %v1432, %v1438
      %vm1441 = vc.u32 %v1439, %v1435
      %v1442 = vsel %vm1441, 1, 0
      %v1443 = vadd.s32 %v1439, %v1435
      %v1444 = vadd.s32 %v1440, %v1442
      %v1445 = vadd.s32 %v1444, %v1434
      %v1446 = vadd.s32 %v1445, %v1436
      %v1447 = vmul.u32 %v1402, %v1393
      %v1448 = vadd.s32 %v1424, %v1443
      %vm1449 = vc.u32 %v1424, %v1443
      %v1450 = vadd.s32 %v1446, 1
      %v1451 = vsel %vm1449, %v1450, %v1446
      %v1452 = vadd.s32 %v1447, %v1451
      %v1453 = vadd.s32 %v1452, 536870912
      %v1454 = vshrl.u32 %v1453, 30
      %v1455 = vshll.u32 %v1454, 30
      %v1456 = vsub.s32 %v1452, %v1455
      %vm1457 = vcmp.lt.s32.totalorder %v1456, 0
      %v1458 = vsub.s32 0, %v1456
      %v1459 = vsel %vm1457, %v1458, %v1456
      %v1460 = vclz %v1459
      %v1461 = vsub.s32 %v1460, 2
      %vm1462 = vcmp.gt.s32.totalorder 0, %v1461
      %v1463 = vsel %vm1462, 0, %v1461
      %v1464 = vsub.s32 32, %v1463
      %v1465 = vshll.u32 %v1456, %v1463
      %v1466 = vshrl.u32 %v1448, %v1464
      %v1467 = vor.u32 %v1465, %v1466
      %v1468 = vsub.s32 4294967266, %v1463
      %v1469 = vadd.s32 %v1468, 127
      %v1470 = vshll.u32 %v1469, 23
      %v1471 = vor.u32 4788187, %v1470
      %v1472 = vand.u32 2147483647, %v1471
      %v1474 = vcvt.s32.f32 %v1467
      %v1475 = vmul.f32 %v1474, %v1472
      %v1476 = vxor.u32 %v1475, 2147483648
      %v1477 = vsel %vm1356, %v1476, %v1475
      %v1478 = vsub.s32 4, %v1454
      %v1479 = vsel %vm1356, %v1478, %v1454
      %v1480 = vsel %vm1355, %v569, %v1477
      %v1481 = vsel %vm1355, 0, %v1479
      %v1482 = vmul.f32 %v1480, %v1480
      %v1483 = vmul.f32 %v1482, -0.001358992
      %v1484 = vadd.f32 %v1483, 0.041655596
      %v1485 = vmul.f32 %v1482, %v1484
      %v1486 = vadd.f32 %v1485, -0.4999988
      %v1487 = vmul.f32 %v1482, %v1486
      %v1488 = vadd.f32 1.0, %v1487
      %v1489 = vmul.f32 %v1480, %v1480
      %v1490 = vmul.f32 %v1489, -0.00019511016
      %v1491 = vadd.f32 %v1490, 0.008332121
      %v1492 = vmul.f32 %v1489, %v1491
      %v1493 = vadd.f32 %v1492, -0.16666654
      %v1494 = vmul.f32 %v1489, %v1493
      %v1495 = vadd.f32 %v1494, 1.0
      %v1496 = vmul.f32 %v1495, %v1480
      %vm1497 = vweird.f32 %v569
      %v1498 = vadd.s32 %v1481, 3
      %v1499 = vand.u32 %v1498, 3
      %vm1500 = vcmp.lt.s32.totalorder %v1499, 2
      %vm1501 = vcmp.eq.s32.totalorder %v1499, 0
      %v1502 = vxor.u32 %v1496, 2147483648
      %v1503 = vsel %vm1501, %v1488, %v1502
      %vm1504 = vcmp.eq.s32.totalorder %v1499, 2
      %v1505 = vxor.u32 %v1488, 2147483648
      %v1506 = vsel %vm1504, %v1505, %v1496
      %v1507 = vsel %vm1500, %v1503, %v1506
      %v1508 = vsel %vm1497, nan, %v1507
      %v1509 = vand.u32 2147483647, %v573
      %vm1510 = vcmp.le.f32.partialorder %v1509, 0.7853982
      %vm1511 = vcmp.lt.s32.totalorder %v573, 0
      %v1512 = vand.u32 %v573, 2139095040
      %v1513 = vshrl.u32 %v1512, 23
      %v1514 = vsub.s32 %v1513, 127
      %v1515 = vand.u32 2147483647, %v573
      %v1516 = vand.u32 %v1515, 8388607
      %v1517 = vor.u32 %v1516, 8388608
      %v1518 = vsub.s32 0, %v1517
      %v1519 = vadd.s32 %v1514, 1
      %vm1520 = vcmp.gt.s32.totalorder %v1519, 0
      %v1521 = vsel %vm1520, %v1519, 0
      %v1522 = vshrl.u32 %v1521, 5
      %v1523 = vand.u32 %v1521, 31
      %v1524 = vsub.s32 32, %v1523
      %v1525 = vshrl.u32 683565275, %v1524
      %v1526 = vshll.u32 683565275, %v1523
      %v1527 = vshrl.u32 2475754826, %v1524
      %v1528 = vor.u32 %v1526, %v1527
      %v1529 = vshll.u32 2475754826, %v1523
      %v1530 = vshrl.u32 2131351028, %v1524
      %v1531 = vor.u32 %v1529, %v1530
      %v1532 = vshll.u32 2131351028, %v1523
      %v1533 = vshrl.u32 2102212464, %v1524
      %v1534 = vor.u32 %v1532, %v1533
      %v1535 = vshll.u32 2102212464, %v1523
      %v1536 = vshrl.u32 920167782, %v1524
      %v1537 = vor.u32 %v1535, %v1536
      %v1538 = vshll.u32 920167782, %v1523
      %v1539 = vshrl.u32 1326507024, %v1524
      %v1540 = vor.u32 %v1538, %v1539
      %vm1541 = vcmp.lt.s32.totalorder %v1522, 1
      %vm1542 = vcmp.lt.s32.totalorder %v1522, 2
      %vm1543 = vcmp.lt.s32.totalorder %v1522, 3
      %vm1544 = vcmp.lt.s32.totalorder %v1522, 4
      %v1545 = vsel %vm1541, %v1525, %v1528
      %v1546 = vsel %vm1544, %v1534, 2102212464
      %v1547 = vsel %vm1543, %v1531, %v1546
      %v1548 = vsel %vm1542, %v1545, %v1547
      %v1549 = vsel %vm1541, %v1528, %v1531
      %v1550 = vsel %vm1544, %v1537, 920167782
      %v1551 = vsel %vm1543, %v1534, %v1550
      %v1552 = vsel %vm1542, %v1549, %v1551
      %v1553 = vsel %vm1541, %v1531, %v1534
      %v1554 = vsel %vm1544, %v1540, 1326507024
      %v1555 = vsel %vm1543, %v1537, %v1554
      %v1556 = vsel %vm1542, %v1553, %v1555
      %v1557 = vshll.u32 %v1517, 8
      %v1558 = vand.u32 %v1557, 65535
      %v1559 = vshrl.u32 %v1557, 16
      %v1560 = vand.u32 %v1556, 65535
      %v1561 = vshrl.u32 %v1556, 16
      %v1562 = vmul.u32 %v1558, %v1560
      %v1563 = vmul.u32 %v1558, %v1561
      %v1564 = vmul.u32 %v1559, %v1560
      %v1565 = vmul.u32 %v1559, %v1561
      %v1566 = vshll.u32 %v1563, 16
      %v1567 = vshrl.u32 %v1563, 16
      %v1568 = vshll.u32 %v1564, 16
      %v1569 = vshrl.u32 %v1564, 16
      %vm1570 = vc.u32 %v1562, %v1566
      %v1571 = vsel %vm1570, 1, 0
      %v1572 = vadd.s32 %v1562, %v1566
      %v1573 = vadd.s32 %v1565, %v1571
      %vm1574 = vc.u32 %v1572, %v1568
      %v1575 = vsel %vm1574, 1, 0
      %v1576 = vadd.s32 %v1572, %v1568
      %v1577 = vadd.s32 %v1573, %v1575
      %v1578 = vadd.s32 %v1577, %v1567
      %v1579 = vadd.s32 %v1578, %v1569
      %v1580 = vand.u32 %v1557, 65535
      %v1581 = vshrl.u32 %v1557, 16
      %v1582 = vand.u32 %v1552, 65535
      %v1583 = vshrl.u32 %v1552, 16
      %v1584 = vmul.u32 %v1580, %v1582
      %v1585 = vmul.u32 %v1580, %v1583
      %v1586 = vmul.u32 %v1581, %v1582
      %v1587 = vmul.u32 %v1581, %v1583
      %v1588 = vshll.u32 %v1585, 16
      %v1589 = vshrl.u32 %v1585, 16
      %v1590 = vshll.u32 %v1586, 16
      %v1591 = vshrl.u32 %v1586, 16
      %vm1592 = vc.u32 %v1584, %v1588
      %v1593 = vsel %vm1592, 1, 0
      %v1594 = vadd.s32 %v1584, %v1588
      %v1595 = vadd.s32 %v1587, %v1593
      %vm1596 = vc.u32 %v1594, %v1590
      %v1597 = vsel %vm1596, 1, 0
      %v1598 = vadd.s32 %v1594, %v1590
      %v1599 = vadd.s32 %v1595, %v1597
      %v1600 = vadd.s32 %v1599, %v1589
      %v1601 = vadd.s32 %v1600, %v1591
      %v1602 = vmul.u32 %v1557, %v1548
      %v1603 = vadd.s32 %v1579, %v1598
      %vm1604 = vc.u32 %v1579, %v1598
      %v1605 = vadd.s32 %v1601, 1
      %v1606 = vsel %vm1604, %v1605, %v1601
      %v1607 = vadd.s32 %v1602, %v1606
      %v1608 = vadd.s32 %v1607, 536870912
      %v1609 = vshrl.u32 %v1608, 30
      %v1610 = vshll.u32 %v1609, 30
      %v1611 = vsub.s32 %v1607, %v1610
      %vm1612 = vcmp.lt.s32.totalorder %v1611, 0
      %v1613 = vsub.s32 0, %v1611
      %v1614 = vsel %vm1612, %v1613, %v1611
      %v1615 = vclz %v1614
      %v1616 = vsub.s32 %v1615, 2
      %vm1617 = vcmp.gt.s32.totalorder 0, %v1616
      %v1618 = vsel %vm1617, 0, %v1616
      %v1619 = vsub.s32 32, %v1618
      %v1620 = vshll.u32 %v1611, %v1618
      %v1621 = vshrl.u32 %v1603, %v1619
      %v1622 = vor.u32 %v1620, %v1621
      %v1623 = vsub.s32 4294967266, %v1618
      %v1624 = vadd.s32 %v1623, 127
      %v1625 = vshll.u32 %v1624, 23
      %v1626 = vor.u32 4788187, %v1625
      %v1627 = vand.u32 2147483647, %v1626
      %v1629 = vcvt.s32.f32 %v1622
      %v1630 = vmul.f32 %v1629, %v1627
      %v1631 = vxor.u32 %v1630, 2147483648
      %v1632 = vsel %vm1511, %v1631, %v1630
      %v1633 = vsub.s32 4, %v1609
      %v1634 = vsel %vm1511, %v1633, %v1609
      %v1635 = vsel %vm1510, %v573, %v1632
      %v1636 = vsel %vm1510, 0, %v1634
      %v1637 = vmul.f32 %v1635, %v1635
      %v1638 = vmul.f32 %v1637, -0.001358992
      %v1639 = vadd.f32 %v1638, 0.041655596
      %v1640 = vmul.f32 %v1637, %v1639
      %v1641 = vadd.f32 %v1640, -0.4999988
      %v1642 = vmul.f32 %v1637, %v1641
      %v1643 = vadd.f32 1.0, %v1642
      %v1644 = vmul.f32 %v1635, %v1635
      %v1645 = vmul.f32 %v1644, -0.00019511016
      %v1646 = vadd.f32 %v1645, 0.008332121
      %v1647 = vmul.f32 %v1644, %v1646
      %v1648 = vadd.f32 %v1647, -0.16666654
      %v1649 = vmul.f32 %v1644, %v1648
      %v1650 = vadd.f32 %v1649, 1.0
      %v1651 = vmul.f32 %v1650, %v1635
      %vm1652 = vweird.f32 %v573
      %v1653 = vadd.s32 %v1636, 3
      %v1654 = vand.u32 %v1653, 3
      %vm1655 = vcmp.lt.s32.totalorder %v1654, 2
      %vm1656 = vcmp.eq.s32.totalorder %v1654, 0
      %v1657 = vxor.u32 %v1651, 2147483648
      %v1658 = vsel %vm1656, %v1643, %v1657
      %vm1659 = vcmp.eq.s32.totalorder %v1654, 2
      %v1660 = vxor.u32 %v1643, 2147483648
      %v1661 = vsel %vm1659, %v1660, %v1651
      %v1662 = vsel %vm1655, %v1658, %v1661
      %v1663 = vsel %vm1652, nan, %v1662
      %v1664 = vand.u32 2147483647, %v577
      %vm1665 = vcmp.le.f32.partialorder %v1664, 0.7853982
      %vm1666 = vcmp.lt.s32.totalorder %v577, 0
      %v1667 = vand.u32 %v577, 2139095040
      %v1668 = vshrl.u32 %v1667, 23
      %v1669 = vsub.s32 %v1668, 127
      %v1670 = vand.u32 2147483647, %v577
      %v1671 = vand.u32 %v1670, 8388607
      %v1672 = vor.u32 %v1671, 8388608
      %v1673 = vsub.s32 0, %v1672
      %v1674 = vadd.s32 %v1669, 1
      %vm1675 = vcmp.gt.s32.totalorder %v1674, 0
      %v1676 = vsel %vm1675, %v1674, 0
      %v1677 = vshrl.u32 %v1676, 5
      %v1678 = vand.u32 %v1676, 31
      %v1679 = vsub.s32 32, %v1678
      %v1680 = vshrl.u32 683565275, %v1679
      %v1681 = vshll.u32 683565275, %v1678
      %v1682 = vshrl.u32 2475754826, %v1679
      %v1683 = vor.u32 %v1681, %v1682
      %v1684 = vshll.u32 2475754826, %v1678
      %v1685 = vshrl.u32 2131351028, %v1679
      %v1686 = vor.u32 %v1684, %v1685
      %v1687 = vshll.u32 2131351028, %v1678
      %v1688 = vshrl.u32 2102212464, %v1679
      %v1689 = vor.u32 %v1687, %v1688
      %v1690 = vshll.u32 2102212464, %v1678
      %v1691 = vshrl.u32 920167782, %v1679
      %v1692 = vor.u32 %v1690, %v1691
      %v1693 = vshll.u32 920167782, %v1678
      %v1694 = vshrl.u32 1326507024, %v1679
      %v1695 = vor.u32 %v1693, %v1694
      %vm1696 = vcmp.lt.s32.totalorder %v1677, 1
      %vm1697 = vcmp.lt.s32.totalorder %v1677, 2
      %vm1698 = vcmp.lt.s32.totalorder %v1677, 3
      %vm1699 = vcmp.lt.s32.totalorder %v1677, 4
      %v1700 = vsel %vm1696, %v1680, %v1683
      %v1701 = vsel %vm1699, %v1689, 2102212464
      %v1702 = vsel %vm1698, %v1686, %v1701
      %v1703 = vsel %vm1697, %v1700, %v1702
      %v1704 = vsel %vm1696, %v1683, %v1686
      %v1705 = vsel %vm1699, %v1692, 920167782
      %v1706 = vsel %vm1698, %v1689, %v1705
      %v1707 = vsel %vm1697, %v1704, %v1706
      %v1708 = vsel %vm1696, %v1686, %v1689
      %v1709 = vsel %vm1699, %v1695, 1326507024
      %v1710 = vsel %vm1698, %v1692, %v1709
      %v1711 = vsel %vm1697, %v1708, %v1710
      %v1712 = vshll.u32 %v1672, 8
      %v1713 = vand.u32 %v1712, 65535
      %v1714 = vshrl.u32 %v1712, 16
      %v1715 = vand.u32 %v1711, 65535
      %v1716 = vshrl.u32 %v1711, 16
      %v1717 = vmul.u32 %v1713, %v1715
      %v1718 = vmul.u32 %v1713, %v1716
      %v1719 = vmul.u32 %v1714, %v1715
      %v1720 = vmul.u32 %v1714, %v1716
      %v1721 = vshll.u32 %v1718, 16
      %v1722 = vshrl.u32 %v1718, 16
      %v1723 = vshll.u32 %v1719, 16
      %v1724 = vshrl.u32 %v1719, 16
      %vm1725 = vc.u32 %v1717, %v1721
      %v1726 = vsel %vm1725, 1, 0
      %v1727 = vadd.s32 %v1717, %v1721
      %v1728 = vadd.s32 %v1720, %v1726
      %vm1729 = vc.u32 %v1727, %v1723
      %v1730 = vsel %vm1729, 1, 0
      %v1731 = vadd.s32 %v1727, %v1723
      %v1732 = vadd.s32 %v1728, %v1730
      %v1733 = vadd.s32 %v1732, %v1722
      %v1734 = vadd.s32 %v1733, %v1724
      %v1735 = vand.u32 %v1712, 65535
      %v1736 = vshrl.u32 %v1712, 16
      %v1737 = vand.u32 %v1707, 65535
      %v1738 = vshrl.u32 %v1707, 16
      %v1739 = vmul.u32 %v1735, %v1737
      %v1740 = vmul.u32 %v1735, %v1738
      %v1741 = vmul.u32 %v1736, %v1737
      %v1742 = vmul.u32 %v1736, %v1738
      %v1743 = vshll.u32 %v1740, 16
      %v1744 = vshrl.u32 %v1740, 16
      %v1745 = vshll.u32 %v1741, 16
      %v1746 = vshrl.u32 %v1741, 16
      %vm1747 = vc.u32 %v1739, %v1743
      %v1748 = vsel %vm1747, 1, 0
      %v1749 = vadd.s32 %v1739, %v1743
      %v1750 = vadd.s32 %v1742, %v1748
      %vm1751 = vc.u32 %v1749, %v1745
      %v1752 = vsel %vm1751, 1, 0
      %v1753 = vadd.s32 %v1749, %v1745
      %v1754 = vadd.s32 %v1750, %v1752
      %v1755 = vadd.s32 %v1754, %v1744
      %v1756 = vadd.s32 %v1755, %v1746
      %v1757 = vmul.u32 %v1712, %v1703
      %v1758 = vadd.s32 %v1734, %v1753
      %vm1759 = vc.u32 %v1734, %v1753
      %v1760 = vadd.s32 %v1756, 1
      %v1761 = vsel %vm1759, %v1760, %v1756
      %v1762 = vadd.s32 %v1757, %v1761
      %v1763 = vadd.s32 %v1762, 536870912
      %v1764 = vshrl.u32 %v1763, 30
      %v1765 = vshll.u32 %v1764, 30
      %v1766 = vsub.s32 %v1762, %v1765
      %vm1767 = vcmp.lt.s32.totalorder %v1766, 0
      %v1768 = vsub.s32 0, %v1766
      %v1769 = vsel %vm1767, %v1768, %v1766
      %v1770 = vclz %v1769
      %v1771 = vsub.s32 %v1770, 2
      %vm1772 = vcmp.gt.s32.totalorder 0, %v1771
      %v1773 = vsel %vm1772, 0, %v1771
      %v1774 = vsub.s32 32, %v1773
      %v1775 = vshll.u32 %v1766, %v1773
      %v1776 = vshrl.u32 %v1758, %v1774
      %v1777 = vor.u32 %v1775, %v1776
      %v1778 = vsub.s32 4294967266, %v1773
      %v1779 = vadd.s32 %v1778, 127
      %v1780 = vshll.u32 %v1779, 23
      %v1781 = vor.u32 4788187, %v1780
      %v1782 = vand.u32 2147483647, %v1781
      %v1784 = vcvt.s32.f32 %v1777
      %v1785 = vmul.f32 %v1784, %v1782
      %v1786 = vxor.u32 %v1785, 2147483648
      %v1787 = vsel %vm1666, %v1786, %v1785
      %v1788 = vsub.s32 4, %v1764
      %v1789 = vsel %vm1666, %v1788, %v1764
      %v1790 = vsel %vm1665, %v577, %v1787
      %v1791 = vsel %vm1665, 0, %v1789
      %v1792 = vmul.f32 %v1790, %v1790
      %v1793 = vmul.f32 %v1792, -0.001358992
      %v1794 = vadd.f32 %v1793, 0.041655596
      %v1795 = vmul.f32 %v1792, %v1794
      %v1796 = vadd.f32 %v1795, -0.4999988
      %v1797 = vmul.f32 %v1792, %v1796
      %v1798 = vadd.f32 1.0, %v1797
      %v1799 = vmul.f32 %v1790, %v1790
      %v1800 = vmul.f32 %v1799, -0.00019511016
      %v1801 = vadd.f32 %v1800, 0.008332121
      %v1802 = vmul.f32 %v1799, %v1801
      %v1803 = vadd.f32 %v1802, -0.16666654
      %v1804 = vmul.f32 %v1799, %v1803
      %v1805 = vadd.f32 %v1804, 1.0
      %v1806 = vmul.f32 %v1805, %v1790
      %vm1807 = vweird.f32 %v577
      %v1808 = vadd.s32 %v1791, 3
      %v1809 = vand.u32 %v1808, 3
      %vm1810 = vcmp.lt.s32.totalorder %v1809, 2
      %vm1811 = vcmp.eq.s32.totalorder %v1809, 0
      %v1812 = vxor.u32 %v1806, 2147483648
      %v1813 = vsel %vm1811, %v1798, %v1812
      %vm1814 = vcmp.eq.s32.totalorder %v1809, 2
      %v1815 = vxor.u32 %v1798, 2147483648
      %v1816 = vsel %vm1814, %v1815, %v1806
      %v1817 = vsel %vm1810, %v1813, %v1816
      %v1818 = vsel %vm1807, nan, %v1817
      %vm1819 = vcmask 261120
      %1820 = vst.msk [vmem:[%s172] sm:$0xff] %vm1819, %v733
      %1821 = vst.msk [vmem:[%s172 + $0x8] sm:$0xff] %vm1819, %v888
      %1822 = vst.msk [vmem:[%s172 + $0x10] sm:$0xff] %vm1819, %v1043
      %1823 = vst.msk [vmem:[%s172 + $0x18] sm:$0xff] %vm1819, %v1198
      %1824 = vst.msk [vmem:[%s172 + $0x20] sm:$0xff] %vm1819, %v1353
      %1825 = vst.msk [vmem:[%s172 + $0x28] sm:$0xff] %vm1819, %v1508
      %1826 = vst.msk [vmem:[%s172 + $0x30] sm:$0xff] %vm1819, %v1663
      %1827 = vst.msk [vmem:[%s172 + $0x38] sm:$0xff] %vm1819, %v1818
      %s1828 = smul.u32 8, %s14
      %p1829 = scmp.lt.s32.totalorder %s1828, 31
      %s1830 = scalar_select %p1829, %s1828, 31
      %s1831 = smul.addr %s1830, 8
      %s1832 = scalar_lea.vmem %s3, %s1831
      // Predicated region
      $region33: #{tpu_custom_call.1} parent=31 // pred_check
        %p1833 = pneg %p100
      $region34: #{tpu_custom_call.1} parent=31 // pred_check_branch
        %1835 = sbr.rel (%p1833) target = $region36
      $region35: #{tpu_custom_call.1} parent=31 // pred_region
        %s1836 = smul.u32 8, %s14
      $region36: #{tpu_custom_call.1} parent=31 // pred_fallthru
        _
    $region32: #{tpu_custom_call.1} parent=5 // pred_fallthru
      _
    %p1837 = scmp.le.s32.totalorder 2, %s9
    // Predicated region
    $region37: #{tpu_custom_call.1} parent=5 // pred_check
      %p1838 = pneg %p1837
    $region38: #{tpu_custom_call.1} parent=5 // pred_check_branch
      %1840 = sbr.rel (%p1838) target = $region40
    $region39: #{tpu_custom_call.1} parent=5 // pred_region
      %s1841 = ssub.s32 %s9, 2
      // Predicated region
      $region41: #{tpu_custom_call.1} parent=39 // pred_check
        %p1842 = pneg %p106
      $region42: #{tpu_custom_call.1} parent=39 // pred_check_branch
        %1844 = sbr.rel (%p1842) target = $region44
      $region43: #{tpu_custom_call.1} parent=39 // pred_region
        %s1845 = smul.u32 8, %s15
        %p1846 = scmp.lt.s32.totalorder %s1845, 31
        %s1847 = scalar_select %p1846, %s1845, 31
        %s1848 = smul.addr %s1847, 8
        %s1849 = scalar_lea.vmem %s3, %s1848
      $region44: #{tpu_custom_call.1} parent=39 // pred_fallthru
        _
    $region40: #{tpu_custom_call.1} parent=5 // pred_fallthru
      _
  $region6: #{tpu_custom_call.1} parent=0 // loop_footer
    %s13 = sadd.s32 1, %s9
  $region7: #{tpu_custom_call.1} parent=0 // loop_footer_branch
    %8 = sbr.rel target = $region3
  $region8: #{tpu_custom_call.1} parent=0 // loop_exit
    _

</llo_original>
